<compile_context>
chip_gen: v5e
topology: v5e:2x2
jax: 0.10.0
libtpu: 0.0.40
codegen_flags: <defaults>
</compile_context>

<pallas_src>
import functools

import jax
import jax.numpy as jnp
from jax.experimental import pallas as pl
from jax.experimental.pallas import tpu as pltpu

M = 256   # dense residuals per keyframe (e.g. flattened flow residuals)
P = 6     # pose DoF per keyframe (se(3))


def _recip(x):
    # EUP approximate reciprocal + one Newton-Raphson refinement (~f32 exact);
    # keeps the VALU slot free of multi-op f32 divide sequences.
    r = pl.reciprocal(x, approx=True)
    return r * (2.0 - x * r)


# ---------------------------------------------------------------------------
# Fused Gauss-Newton kernel: `steps` iterations of
#   res = J (p - gt) + r0
#   delta = (J^T diag(w) J + damping*I)^{-1} J^T diag(w) res ;  p <- p - delta
# with everything loop-invariant (Gram, factorization, Kw planes) hoisted.
# ---------------------------------------------------------------------------
def _dense_ba_kernel(jt_ref, r0_ref, w_ref, gt_ref, p0_ref, out_ref, *,
                     steps, damping):
    # jt_ref : (P, T, M)  Jacobian planes (residual axis on lanes)
    # r0_ref : (T, M)     constant residual offset
    # w_ref  : (T, M)     per-residual confidence weights
    # gt_ref : (T, P)     linearization / ground-truth poses
    # p0_ref : (T, P)     initial poses (buffer aliased with out_ref)
    # out_ref: (T, P)     refined poses
    n_pose = gt_ref.shape[1]

    w = w_ref[...]                                     # (T, M)
    j_rows = [jt_ref[k] for k in range(n_pose)]        # each (T, M)
    jw_rows = [j_rows[k] * w for k in range(n_pose)]   # weighted rows

    # --- hoist: fold the constant -J*gt term into the residual offset.
    gt = gt_ref[...]                                   # (T, P)
    r0p = r0_ref[...]                                  # (T, M)
    for k in range(n_pose):
        r0p = r0p - j_rows[k] * gt[:, k:k + 1]

    # --- hoist: damped Gram A = J^T diag(w) J + damping*I (symmetric half;
    #     the unused weighted ||res||^2 entry is never formed).  XLU reduces.
    A = [[None] * n_pose for _ in range(n_pose)]
    for i in range(n_pose):
        for j in range(i, n_pose):
            v = jnp.sum(jw_rows[i] * j_rows[j], axis=1, keepdims=True)  # (T,1)
            if j == i:
                v = v + damping
            A[i][j] = v
            if j != i:
                A[j][i] = v

    # --- hoist: in-place LU of A (Doolittle, no pivot -- A is SPD), pivots
    #     through the EUP reciprocal.  Done once, not per GN step.
    inv_diag = [None] * n_pose
    for k in range(n_pose):
        inv_piv = _recip(A[k][k])
        inv_diag[k] = inv_piv
        for i in range(k + 1, n_pose):
            f = A[i][k] * inv_piv
            A[i][k] = f                                # unit-lower L multiplier
            for j in range(k + 1, n_pose):
                A[i][j] = A[i][j] - f * A[k][j]

    # --- hoist: Kw = A^{-1} (W J) rows via triangular solves applied once to
    #     the lane-wide weighted Jacobian planes.  Per-step delta then reduces
    #     to P lane reductions against these planes (no per-step 6x6 solve).
    kw = list(jw_rows)
    for k in range(n_pose):                            # forward (unit-lower L)
        for i in range(k + 1, n_pose):
            kw[i] = kw[i] - A[i][k] * kw[k]
    for k in reversed(range(n_pose)):                  # backward (upper U)
        for j in range(k + 1, n_pose):
            kw[k] = kw[k] - A[k][j] * kw[j]
        kw[k] = kw[k] * inv_diag[k]

    # --- Gauss-Newton iterations: residual re-evaluation + P lane reductions.
    p0 = p0_ref[...]                                   # (T, P)
    p_cols = [p0[:, k:k + 1] for k in range(n_pose)]   # (T, 1) lane columns
    for _ in range(steps):
        res = r0p                                      # res = J p + (r0 - J gt)
        for k in range(n_pose):
            res = res + j_rows[k] * p_cols[k]          # (T, M) broadcast MACs
        for k in range(n_pose):
            delta_k = jnp.sum(kw[k] * res, axis=1, keepdims=True)   # (T, 1)
            p_cols[k] = p_cols[k] - delta_k

    # --- single lane-dense pose writeback (iota/select assembly, one store).
    col = jax.lax.broadcasted_iota(jnp.int32, p0.shape, 1)
    p_out = p0
    for k in range(n_pose):
        p_out = jnp.where(col == k, p_cols[k], p_out)
    out_ref[...] = p_out


def _dense_ba_pallas(Jt, r0, w, gt, p0, *, steps, damping):
    t_win, n_pose = p0.shape
    kernel = functools.partial(_dense_ba_kernel, steps=steps, damping=damping)
    vmem_spec = pl.BlockSpec(memory_space=pltpu.MemorySpace.VMEM)
    return pl.pallas_call(
        kernel,
        out_shape=jax.ShapeDtypeStruct((t_win, n_pose), jnp.float32),
        in_specs=[vmem_spec] * 5,
        out_specs=vmem_spec,
        input_output_aliases={4: 0},   # reuse the p0 buffer for refined poses
    )(Jt, r0, w, gt, p0)


# ---------------------------------------------------------------------------
# dense_ba: Gauss-Newton over the window [t_start, t_end), `steps` iterations.
# Synthetic linear residual model r(p) = J (p - p_gt) + r0 stands in for the
# re-projection residuals that Backend.dense_ba would recompute each step.
# Jt is stored persistently in (P, T, M) layout; r0/w as (T, M).
# ---------------------------------------------------------------------------
@functools.partial(jax.jit,
                   static_argnames=("t_start", "t_end", "steps", "damping"))
def dense_ba(poses, poses_gt, Jt, r0, w, *, t_start, t_end, steps=6,
             damping=1e-3):
    """Jt:(P,T,M) f32, r0:(T,M), w:(T,M), poses/poses_gt:(T,P) -> (T,P)."""
    sl = slice(t_start, t_end)
    p_new = _dense_ba_pallas(Jt[:, sl, :], r0[sl], w[sl], poses_gt[sl],
                             poses[sl], steps=steps, damping=damping)
    return poses.at[sl].set(p_new)


# ---------------------------------------------------------------------------
# BundleAdjustment wrapper mirroring the PyTorch module's forward() control
# flow: gate on counter vs. frontend window, then run full-window dense BA.
# ---------------------------------------------------------------------------
class BundleAdjustment:
    def __init__(self, config, video):
        self.config = config
        self.video = video
        self.frontend_window = config["tracking"]["frontend"]["window"]
        self.last_t = -1
        self.ba_counter = -1
        # TODO(synk): Backend(net, video, ...) builds a learned factor graph
        # (correlation volumes, GRU updates); those internals are not in the
        # source module, so a linear residual model stands in for them here.

    def __call__(self):
        cur_t = self.video["counter"]
        t = cur_t
        if cur_t > self.frontend_window:
            t_start = 0
            self.video["poses"] = dense_ba(
                self.video["poses"], self.video["poses_gt"],
                self.video["Jt"], self.video["r0"], self.video["w"],
                t_start=t_start, t_end=t, steps=6)
            self.last_t = cur_t
            return self.video["poses"]
        return None


if __name__ == "__main__":
    key = jax.random.PRNGKey(0)
    k1, k2, k3, k4 = jax.random.split(key, 4)

    T = 8                       # keyframes currently in the video buffer
    config = {"tracking": {"frontend": {"window": 4}}}

    J = jax.random.normal(k1, (T, M, P), dtype=jnp.float32)
    w = jax.nn.sigmoid(jax.random.normal(k2, (T, M, 1))).astype(jnp.float32)
    r0 = 0.01 * jax.random.normal(k3, (T, M, 1), dtype=jnp.float32)
    poses_gt = 0.1 * jax.random.normal(k4, (T, P), dtype=jnp.float32)
    poses = jnp.zeros((T, P), dtype=jnp.float32)

    # One-time layout plumbing when the factor graph is (re)built: residual
    # axis M on lanes, pose DoF as leading planes (no per-call transpose).
    video = {"counter": T, "poses": poses, "poses_gt": poses_gt,
             "Jt": jnp.transpose(J, (2, 0, 1)),     # (P, T, M)
             "r0": r0[..., 0], "w": w[..., 0]}      # (T, M)

    ba = BundleAdjustment(config, video)
    out = ba()
    out = jax.block_until_ready(out)

    # Pure-JAX reference of the same fused Gauss-Newton loop.
    def dense_ba_ref(poses, poses_gt, J, r0, w, *, steps=6, damping=1e-3):
        p = poses
        eye = jnp.eye(P, dtype=jnp.float32)[None]
        hp = jax.lax.Precision.HIGHEST
        for _ in range(steps):
            res = jnp.einsum("tmp,tp->tm", J, p - poses_gt,
                             precision=hp)[..., None] + r0
            Jw = J * w
            H = jnp.einsum("tmi,tmj->tij", Jw, J, precision=hp)
            b = jnp.einsum("tmi,tmj->tij", Jw, res, precision=hp)
            delta = jnp.linalg.solve(H + damping * eye, b)[..., 0]
            p = p - delta
        return p

    ref = dense_ba_ref(poses, poses_gt, J, r0, w)
    assert out.shape == (T, P) and out.dtype == jnp.float32
    assert jnp.allclose(out, ref, atol=1e-3, rtol=1e-3), \
        float(jnp.max(jnp.abs(out - ref)))

    print("KERNEL_OK")
</pallas_src>

<mosaic_0001>
module attributes {stable_mosaic.version = 11 : i64} {
  func.func @_dense_ba_kernel(%arg0: memref<6x8x256xf32, #tpu.memory_space<vmem>>, %arg1: memref<8x256xf32, #tpu.memory_space<vmem>>, %arg2: memref<8x256xf32, #tpu.memory_space<vmem>>, %arg3: memref<8x6xf32, #tpu.memory_space<vmem>>, %arg4: memref<8x6xf32, #tpu.memory_space<vmem>>, %arg5: memref<8x6xf32, #tpu.memory_space<vmem>>) attributes {dimension_semantics = [], scalar_prefetch = 0 : i64, scratch_operands = 0 : i64, tpu.core_type = #tpu.core_type<tc>} {
    %c0 = arith.constant 0 : index
    %c0_0 = arith.constant 0 : index
    %0 = vector.load %arg2[%c0, %c0_0] : memref<8x256xf32, #tpu.memory_space<vmem>>, vector<8x256xf32>
    %c0_1 = arith.constant 0 : index
    %c0_2 = arith.constant 0 : index
    %c0_3 = arith.constant 0 : index
    %1 = vector.load %arg0[%c0_1, %c0_2, %c0_3] : memref<6x8x256xf32, #tpu.memory_space<vmem>>, vector<1x8x256xf32>
    %2 = vector.shape_cast %1 : vector<1x8x256xf32> to vector<8x256xf32>
    %c1 = arith.constant 1 : index
    %c0_4 = arith.constant 0 : index
    %c0_5 = arith.constant 0 : index
    %3 = vector.load %arg0[%c1, %c0_4, %c0_5] : memref<6x8x256xf32, #tpu.memory_space<vmem>>, vector<1x8x256xf32>
    %4 = vector.shape_cast %3 : vector<1x8x256xf32> to vector<8x256xf32>
    %c2 = arith.constant 2 : index
    %c0_6 = arith.constant 0 : index
    %c0_7 = arith.constant 0 : index
    %5 = vector.load %arg0[%c2, %c0_6, %c0_7] : memref<6x8x256xf32, #tpu.memory_space<vmem>>, vector<1x8x256xf32>
    %6 = vector.shape_cast %5 : vector<1x8x256xf32> to vector<8x256xf32>
    %c3 = arith.constant 3 : index
    %c0_8 = arith.constant 0 : index
    %c0_9 = arith.constant 0 : index
    %7 = vector.load %arg0[%c3, %c0_8, %c0_9] : memref<6x8x256xf32, #tpu.memory_space<vmem>>, vector<1x8x256xf32>
    %8 = vector.shape_cast %7 : vector<1x8x256xf32> to vector<8x256xf32>
    %c4 = arith.constant 4 : index
    %c0_10 = arith.constant 0 : index
    %c0_11 = arith.constant 0 : index
    %9 = vector.load %arg0[%c4, %c0_10, %c0_11] : memref<6x8x256xf32, #tpu.memory_space<vmem>>, vector<1x8x256xf32>
    %10 = vector.shape_cast %9 : vector<1x8x256xf32> to vector<8x256xf32>
    %c5 = arith.constant 5 : index
    %c0_12 = arith.constant 0 : index
    %c0_13 = arith.constant 0 : index
    %11 = vector.load %arg0[%c5, %c0_12, %c0_13] : memref<6x8x256xf32, #tpu.memory_space<vmem>>, vector<1x8x256xf32>
    %12 = vector.shape_cast %11 : vector<1x8x256xf32> to vector<8x256xf32>
    %13 = arith.mulf %2, %0 : vector<8x256xf32>
    %14 = arith.mulf %4, %0 : vector<8x256xf32>
    %15 = arith.mulf %6, %0 : vector<8x256xf32>
    %16 = arith.mulf %8, %0 : vector<8x256xf32>
    %17 = arith.mulf %10, %0 : vector<8x256xf32>
    %18 = arith.mulf %12, %0 : vector<8x256xf32>
    %c0_14 = arith.constant 0 : index
    %c0_15 = arith.constant 0 : index
    %19 = vector.load %arg3[%c0_14, %c0_15] : memref<8x6xf32, #tpu.memory_space<vmem>>, vector<8x6xf32>
    %c0_16 = arith.constant 0 : index
    %c0_17 = arith.constant 0 : index
    %20 = vector.load %arg1[%c0_16, %c0_17] : memref<8x256xf32, #tpu.memory_space<vmem>>, vector<8x256xf32>
    %21 = vector.extract_strided_slice %19 {offsets = [0, 0], sizes = [8, 1], strides = [1, 1]} : vector<8x6xf32> to vector<8x1xf32>
    %22 = vector.broadcast %21 : vector<8x1xf32> to vector<8x256xf32>
    %23 = arith.mulf %2, %22 : vector<8x256xf32>
    %24 = arith.subf %20, %23 : vector<8x256xf32>
    %25 = vector.extract_strided_slice %19 {offsets = [0, 1], sizes = [8, 1], strides = [1, 1]} : vector<8x6xf32> to vector<8x1xf32>
    %26 = vector.broadcast %25 : vector<8x1xf32> to vector<8x256xf32>
    %27 = arith.mulf %4, %26 : vector<8x256xf32>
    %28 = arith.subf %24, %27 : vector<8x256xf32>
    %29 = vector.extract_strided_slice %19 {offsets = [0, 2], sizes = [8, 1], strides = [1, 1]} : vector<8x6xf32> to vector<8x1xf32>
    %30 = vector.broadcast %29 : vector<8x1xf32> to vector<8x256xf32>
    %31 = arith.mulf %6, %30 : vector<8x256xf32>
    %32 = arith.subf %28, %31 : vector<8x256xf32>
    %33 = vector.extract_strided_slice %19 {offsets = [0, 3], sizes = [8, 1], strides = [1, 1]} : vector<8x6xf32> to vector<8x1xf32>
    %34 = vector.broadcast %33 : vector<8x1xf32> to vector<8x256xf32>
    %35 = arith.mulf %8, %34 : vector<8x256xf32>
    %36 = arith.subf %32, %35 : vector<8x256xf32>
    %37 = vector.extract_strided_slice %19 {offsets = [0, 4], sizes = [8, 1], strides = [1, 1]} : vector<8x6xf32> to vector<8x1xf32>
    %38 = vector.broadcast %37 : vector<8x1xf32> to vector<8x256xf32>
    %39 = arith.mulf %10, %38 : vector<8x256xf32>
    %40 = arith.subf %36, %39 : vector<8x256xf32>
    %41 = vector.extract_strided_slice %19 {offsets = [0, 5], sizes = [8, 1], strides = [1, 1]} : vector<8x6xf32> to vector<8x1xf32>
    %42 = vector.broadcast %41 : vector<8x1xf32> to vector<8x256xf32>
    %43 = arith.mulf %12, %42 : vector<8x256xf32>
    %44 = arith.subf %40, %43 : vector<8x256xf32>
    %45 = arith.mulf %13, %2 : vector<8x256xf32>
    %cst = arith.constant dense<0.000000e+00> : vector<8xf32>
    %46 = vector.multi_reduction <add>, %45, %cst [1] : vector<8x256xf32> to vector<8xf32>
    %47 = vector.shape_cast %46 : vector<8xf32> to vector<8x1xf32>
    %cst_18 = arith.constant 1.000000e-03 : f32
    %48 = vector.broadcast %cst_18 : f32 to vector<8x1xf32>
    %49 = arith.addf %47, %48 : vector<8x1xf32>
    %50 = arith.mulf %13, %4 : vector<8x256xf32>
    %cst_19 = arith.constant dense<0.000000e+00> : vector<8xf32>
    %51 = vector.multi_reduction <add>, %50, %cst_19 [1] : vector<8x256xf32> to vector<8xf32>
    %52 = vector.shape_cast %51 : vector<8xf32> to vector<8x1xf32>
    %53 = arith.mulf %13, %6 : vector<8x256xf32>
    %cst_20 = arith.constant dense<0.000000e+00> : vector<8xf32>
    %54 = vector.multi_reduction <add>, %53, %cst_20 [1] : vector<8x256xf32> to vector<8xf32>
    %55 = vector.shape_cast %54 : vector<8xf32> to vector<8x1xf32>
    %56 = arith.mulf %13, %8 : vector<8x256xf32>
    %cst_21 = arith.constant dense<0.000000e+00> : vector<8xf32>
    %57 = vector.multi_reduction <add>, %56, %cst_21 [1] : vector<8x256xf32> to vector<8xf32>
    %58 = vector.shape_cast %57 : vector<8xf32> to vector<8x1xf32>
    %59 = arith.mulf %13, %10 : vector<8x256xf32>
    %cst_22 = arith.constant dense<0.000000e+00> : vector<8xf32>
    %60 = vector.multi_reduction <add>, %59, %cst_22 [1] : vector<8x256xf32> to vector<8xf32>
    %61 = vector.shape_cast %60 : vector<8xf32> to vector<8x1xf32>
    %62 = arith.mulf %13, %12 : vector<8x256xf32>
    %cst_23 = arith.constant dense<0.000000e+00> : vector<8xf32>
    %63 = vector.multi_reduction <add>, %62, %cst_23 [1] : vector<8x256xf32> to vector<8xf32>
    %64 = vector.shape_cast %63 : vector<8xf32> to vector<8x1xf32>
    %65 = arith.mulf %14, %4 : vector<8x256xf32>
    %cst_24 = arith.constant dense<0.000000e+00> : vector<8xf32>
    %66 = vector.multi_reduction <add>, %65, %cst_24 [1] : vector<8x256xf32> to vector<8xf32>
    %67 = vector.shape_cast %66 : vector<8xf32> to vector<8x1xf32>
    %cst_25 = arith.constant 1.000000e-03 : f32
    %68 = vector.broadcast %cst_25 : f32 to vector<8x1xf32>
    %69 = arith.addf %67, %68 : vector<8x1xf32>
    %70 = arith.mulf %14, %6 : vector<8x256xf32>
    %cst_26 = arith.constant dense<0.000000e+00> : vector<8xf32>
    %71 = vector.multi_reduction <add>, %70, %cst_26 [1] : vector<8x256xf32> to vector<8xf32>
    %72 = vector.shape_cast %71 : vector<8xf32> to vector<8x1xf32>
    %73 = arith.mulf %14, %8 : vector<8x256xf32>
    %cst_27 = arith.constant dense<0.000000e+00> : vector<8xf32>
    %74 = vector.multi_reduction <add>, %73, %cst_27 [1] : vector<8x256xf32> to vector<8xf32>
    %75 = vector.shape_cast %74 : vector<8xf32> to vector<8x1xf32>
    %76 = arith.mulf %14, %10 : vector<8x256xf32>
    %cst_28 = arith.constant dense<0.000000e+00> : vector<8xf32>
    %77 = vector.multi_reduction <add>, %76, %cst_28 [1] : vector<8x256xf32> to vector<8xf32>
    %78 = vector.shape_cast %77 : vector<8xf32> to vector<8x1xf32>
    %79 = arith.mulf %14, %12 : vector<8x256xf32>
    %cst_29 = arith.constant dense<0.000000e+00> : vector<8xf32>
    %80 = vector.multi_reduction <add>, %79, %cst_29 [1] : vector<8x256xf32> to vector<8xf32>
    %81 = vector.shape_cast %80 : vector<8xf32> to vector<8x1xf32>
    %82 = arith.mulf %15, %6 : vector<8x256xf32>
    %cst_30 = arith.constant dense<0.000000e+00> : vector<8xf32>
    %83 = vector.multi_reduction <add>, %82, %cst_30 [1] : vector<8x256xf32> to vector<8xf32>
    %84 = vector.shape_cast %83 : vector<8xf32> to vector<8x1xf32>
    %cst_31 = arith.constant 1.000000e-03 : f32
    %85 = vector.broadcast %cst_31 : f32 to vector<8x1xf32>
    %86 = arith.addf %84, %85 : vector<8x1xf32>
    %87 = arith.mulf %15, %8 : vector<8x256xf32>
    %cst_32 = arith.constant dense<0.000000e+00> : vector<8xf32>
    %88 = vector.multi_reduction <add>, %87, %cst_32 [1] : vector<8x256xf32> to vector<8xf32>
    %89 = vector.shape_cast %88 : vector<8xf32> to vector<8x1xf32>
    %90 = arith.mulf %15, %10 : vector<8x256xf32>
    %cst_33 = arith.constant dense<0.000000e+00> : vector<8xf32>
    %91 = vector.multi_reduction <add>, %90, %cst_33 [1] : vector<8x256xf32> to vector<8xf32>
    %92 = vector.shape_cast %91 : vector<8xf32> to vector<8x1xf32>
    %93 = arith.mulf %15, %12 : vector<8x256xf32>
    %cst_34 = arith.constant dense<0.000000e+00> : vector<8xf32>
    %94 = vector.multi_reduction <add>, %93, %cst_34 [1] : vector<8x256xf32> to vector<8xf32>
    %95 = vector.shape_cast %94 : vector<8xf32> to vector<8x1xf32>
    %96 = arith.mulf %16, %8 : vector<8x256xf32>
    %cst_35 = arith.constant dense<0.000000e+00> : vector<8xf32>
    %97 = vector.multi_reduction <add>, %96, %cst_35 [1] : vector<8x256xf32> to vector<8xf32>
    %98 = vector.shape_cast %97 : vector<8xf32> to vector<8x1xf32>
    %cst_36 = arith.constant 1.000000e-03 : f32
    %99 = vector.broadcast %cst_36 : f32 to vector<8x1xf32>
    %100 = arith.addf %98, %99 : vector<8x1xf32>
    %101 = arith.mulf %16, %10 : vector<8x256xf32>
    %cst_37 = arith.constant dense<0.000000e+00> : vector<8xf32>
    %102 = vector.multi_reduction <add>, %101, %cst_37 [1] : vector<8x256xf32> to vector<8xf32>
    %103 = vector.shape_cast %102 : vector<8xf32> to vector<8x1xf32>
    %104 = arith.mulf %16, %12 : vector<8x256xf32>
    %cst_38 = arith.constant dense<0.000000e+00> : vector<8xf32>
    %105 = vector.multi_reduction <add>, %104, %cst_38 [1] : vector<8x256xf32> to vector<8xf32>
    %106 = vector.shape_cast %105 : vector<8xf32> to vector<8x1xf32>
    %107 = arith.mulf %17, %10 : vector<8x256xf32>
    %cst_39 = arith.constant dense<0.000000e+00> : vector<8xf32>
    %108 = vector.multi_reduction <add>, %107, %cst_39 [1] : vector<8x256xf32> to vector<8xf32>
    %109 = vector.shape_cast %108 : vector<8xf32> to vector<8x1xf32>
    %cst_40 = arith.constant 1.000000e-03 : f32
    %110 = vector.broadcast %cst_40 : f32 to vector<8x1xf32>
    %111 = arith.addf %109, %110 : vector<8x1xf32>
    %112 = arith.mulf %17, %12 : vector<8x256xf32>
    %cst_41 = arith.constant dense<0.000000e+00> : vector<8xf32>
    %113 = vector.multi_reduction <add>, %112, %cst_41 [1] : vector<8x256xf32> to vector<8xf32>
    %114 = vector.shape_cast %113 : vector<8xf32> to vector<8x1xf32>
    %115 = arith.mulf %18, %12 : vector<8x256xf32>
    %cst_42 = arith.constant dense<0.000000e+00> : vector<8xf32>
    %116 = vector.multi_reduction <add>, %115, %cst_42 [1] : vector<8x256xf32> to vector<8xf32>
    %117 = vector.shape_cast %116 : vector<8xf32> to vector<8x1xf32>
    %cst_43 = arith.constant 1.000000e-03 : f32
    %118 = vector.broadcast %cst_43 : f32 to vector<8x1xf32>
    %119 = arith.addf %117, %118 : vector<8x1xf32>
    %120 = tpu.reciprocal %49 {approx = true} : vector<8x1xf32> -> vector<8x1xf32>
    %121 = arith.mulf %49, %120 : vector<8x1xf32>
    %cst_44 = arith.constant 2.000000e+00 : f32
    %122 = vector.broadcast %cst_44 : f32 to vector<8x1xf32>
    %123 = arith.subf %122, %121 : vector<8x1xf32>
    %124 = arith.mulf %120, %123 : vector<8x1xf32>
    %125 = arith.mulf %52, %124 : vector<8x1xf32>
    %126 = arith.mulf %125, %52 : vector<8x1xf32>
    %127 = arith.subf %69, %126 : vector<8x1xf32>
    %128 = arith.mulf %125, %55 : vector<8x1xf32>
    %129 = arith.subf %72, %128 : vector<8x1xf32>
    %130 = arith.mulf %125, %58 : vector<8x1xf32>
    %131 = arith.subf %75, %130 : vector<8x1xf32>
    %132 = arith.mulf %125, %61 : vector<8x1xf32>
    %133 = arith.subf %78, %132 : vector<8x1xf32>
    %134 = arith.mulf %125, %64 : vector<8x1xf32>
    %135 = arith.subf %81, %134 : vector<8x1xf32>
    %136 = arith.mulf %55, %124 : vector<8x1xf32>
    %137 = arith.mulf %136, %52 : vector<8x1xf32>
    %138 = arith.subf %72, %137 : vector<8x1xf32>
    %139 = arith.mulf %136, %55 : vector<8x1xf32>
    %140 = arith.subf %86, %139 : vector<8x1xf32>
    %141 = arith.mulf %136, %58 : vector<8x1xf32>
    %142 = arith.subf %89, %141 : vector<8x1xf32>
    %143 = arith.mulf %136, %61 : vector<8x1xf32>
    %144 = arith.subf %92, %143 : vector<8x1xf32>
    %145 = arith.mulf %136, %64 : vector<8x1xf32>
    %146 = arith.subf %95, %145 : vector<8x1xf32>
    %147 = arith.mulf %58, %124 : vector<8x1xf32>
    %148 = arith.mulf %147, %52 : vector<8x1xf32>
    %149 = arith.subf %75, %148 : vector<8x1xf32>
    %150 = arith.mulf %147, %55 : vector<8x1xf32>
    %151 = arith.subf %89, %150 : vector<8x1xf32>
    %152 = arith.mulf %147, %58 : vector<8x1xf32>
    %153 = arith.subf %100, %152 : vector<8x1xf32>
    %154 = arith.mulf %147, %61 : vector<8x1xf32>
    %155 = arith.subf %103, %154 : vector<8x1xf32>
    %156 = arith.mulf %147, %64 : vector<8x1xf32>
    %157 = arith.subf %106, %156 : vector<8x1xf32>
    %158 = arith.mulf %61, %124 : vector<8x1xf32>
    %159 = arith.mulf %158, %52 : vector<8x1xf32>
    %160 = arith.subf %78, %159 : vector<8x1xf32>
    %161 = arith.mulf %158, %55 : vector<8x1xf32>
    %162 = arith.subf %92, %161 : vector<8x1xf32>
    %163 = arith.mulf %158, %58 : vector<8x1xf32>
    %164 = arith.subf %103, %163 : vector<8x1xf32>
    %165 = arith.mulf %158, %61 : vector<8x1xf32>
    %166 = arith.subf %111, %165 : vector<8x1xf32>
    %167 = arith.mulf %158, %64 : vector<8x1xf32>
    %168 = arith.subf %114, %167 : vector<8x1xf32>
    %169 = arith.mulf %64, %124 : vector<8x1xf32>
    %170 = arith.mulf %169, %52 : vector<8x1xf32>
    %171 = arith.subf %81, %170 : vector<8x1xf32>
    %172 = arith.mulf %169, %55 : vector<8x1xf32>
    %173 = arith.subf %95, %172 : vector<8x1xf32>
    %174 = arith.mulf %169, %58 : vector<8x1xf32>
    %175 = arith.subf %106, %174 : vector<8x1xf32>
    %176 = arith.mulf %169, %61 : vector<8x1xf32>
    %177 = arith.subf %114, %176 : vector<8x1xf32>
    %178 = arith.mulf %169, %64 : vector<8x1xf32>
    %179 = arith.subf %119, %178 : vector<8x1xf32>
    %180 = tpu.reciprocal %127 {approx = true} : vector<8x1xf32> -> vector<8x1xf32>
    %181 = arith.mulf %127, %180 : vector<8x1xf32>
    %cst_45 = arith.constant 2.000000e+00 : f32
    %182 = vector.broadcast %cst_45 : f32 to vector<8x1xf32>
    %183 = arith.subf %182, %181 : vector<8x1xf32>
    %184 = arith.mulf %180, %183 : vector<8x1xf32>
    %185 = arith.mulf %138, %184 : vector<8x1xf32>
    %186 = arith.mulf %185, %129 : vector<8x1xf32>
    %187 = arith.subf %140, %186 : vector<8x1xf32>
    %188 = arith.mulf %185, %131 : vector<8x1xf32>
    %189 = arith.subf %142, %188 : vector<8x1xf32>
    %190 = arith.mulf %185, %133 : vector<8x1xf32>
    %191 = arith.subf %144, %190 : vector<8x1xf32>
    %192 = arith.mulf %185, %135 : vector<8x1xf32>
    %193 = arith.subf %146, %192 : vector<8x1xf32>
    %194 = arith.mulf %149, %184 : vector<8x1xf32>
    %195 = arith.mulf %194, %129 : vector<8x1xf32>
    %196 = arith.subf %151, %195 : vector<8x1xf32>
    %197 = arith.mulf %194, %131 : vector<8x1xf32>
    %198 = arith.subf %153, %197 : vector<8x1xf32>
    %199 = arith.mulf %194, %133 : vector<8x1xf32>
    %200 = arith.subf %155, %199 : vector<8x1xf32>
    %201 = arith.mulf %194, %135 : vector<8x1xf32>
    %202 = arith.subf %157, %201 : vector<8x1xf32>
    %203 = arith.mulf %160, %184 : vector<8x1xf32>
    %204 = arith.mulf %203, %129 : vector<8x1xf32>
    %205 = arith.subf %162, %204 : vector<8x1xf32>
    %206 = arith.mulf %203, %131 : vector<8x1xf32>
    %207 = arith.subf %164, %206 : vector<8x1xf32>
    %208 = arith.mulf %203, %133 : vector<8x1xf32>
    %209 = arith.subf %166, %208 : vector<8x1xf32>
    %210 = arith.mulf %203, %135 : vector<8x1xf32>
    %211 = arith.subf %168, %210 : vector<8x1xf32>
    %212 = arith.mulf %171, %184 : vector<8x1xf32>
    %213 = arith.mulf %212, %129 : vector<8x1xf32>
    %214 = arith.subf %173, %213 : vector<8x1xf32>
    %215 = arith.mulf %212, %131 : vector<8x1xf32>
    %216 = arith.subf %175, %215 : vector<8x1xf32>
    %217 = arith.mulf %212, %133 : vector<8x1xf32>
    %218 = arith.subf %177, %217 : vector<8x1xf32>
    %219 = arith.mulf %212, %135 : vector<8x1xf32>
    %220 = arith.subf %179, %219 : vector<8x1xf32>
    %221 = tpu.reciprocal %187 {approx = true} : vector<8x1xf32> -> vector<8x1xf32>
    %222 = arith.mulf %187, %221 : vector<8x1xf32>
    %cst_46 = arith.constant 2.000000e+00 : f32
    %223 = vector.broadcast %cst_46 : f32 to vector<8x1xf32>
    %224 = arith.subf %223, %222 : vector<8x1xf32>
    %225 = arith.mulf %221, %224 : vector<8x1xf32>
    %226 = arith.mulf %196, %225 : vector<8x1xf32>
    %227 = arith.mulf %226, %189 : vector<8x1xf32>
    %228 = arith.subf %198, %227 : vector<8x1xf32>
    %229 = arith.mulf %226, %191 : vector<8x1xf32>
    %230 = arith.subf %200, %229 : vector<8x1xf32>
    %231 = arith.mulf %226, %193 : vector<8x1xf32>
    %232 = arith.subf %202, %231 : vector<8x1xf32>
    %233 = arith.mulf %205, %225 : vector<8x1xf32>
    %234 = arith.mulf %233, %189 : vector<8x1xf32>
    %235 = arith.subf %207, %234 : vector<8x1xf32>
    %236 = arith.mulf %233, %191 : vector<8x1xf32>
    %237 = arith.subf %209, %236 : vector<8x1xf32>
    %238 = arith.mulf %233, %193 : vector<8x1xf32>
    %239 = arith.subf %211, %238 : vector<8x1xf32>
    %240 = arith.mulf %214, %225 : vector<8x1xf32>
    %241 = arith.mulf %240, %189 : vector<8x1xf32>
    %242 = arith.subf %216, %241 : vector<8x1xf32>
    %243 = arith.mulf %240, %191 : vector<8x1xf32>
    %244 = arith.subf %218, %243 : vector<8x1xf32>
    %245 = arith.mulf %240, %193 : vector<8x1xf32>
    %246 = arith.subf %220, %245 : vector<8x1xf32>
    %247 = tpu.reciprocal %228 {approx = true} : vector<8x1xf32> -> vector<8x1xf32>
    %248 = arith.mulf %228, %247 : vector<8x1xf32>
    %cst_47 = arith.constant 2.000000e+00 : f32
    %249 = vector.broadcast %cst_47 : f32 to vector<8x1xf32>
    %250 = arith.subf %249, %248 : vector<8x1xf32>
    %251 = arith.mulf %247, %250 : vector<8x1xf32>
    %252 = arith.mulf %235, %251 : vector<8x1xf32>
    %253 = arith.mulf %252, %230 : vector<8x1xf32>
    %254 = arith.subf %237, %253 : vector<8x1xf32>
    %255 = arith.mulf %252, %232 : vector<8x1xf32>
    %256 = arith.subf %239, %255 : vector<8x1xf32>
    %257 = arith.mulf %242, %251 : vector<8x1xf32>
    %258 = arith.mulf %257, %230 : vector<8x1xf32>
    %259 = arith.subf %244, %258 : vector<8x1xf32>
    %260 = arith.mulf %257, %232 : vector<8x1xf32>
    %261 = arith.subf %246, %260 : vector<8x1xf32>
    %262 = tpu.reciprocal %254 {approx = true} : vector<8x1xf32> -> vector<8x1xf32>
    %263 = arith.mulf %254, %262 : vector<8x1xf32>
    %cst_48 = arith.constant 2.000000e+00 : f32
    %264 = vector.broadcast %cst_48 : f32 to vector<8x1xf32>
    %265 = arith.subf %264, %263 : vector<8x1xf32>
    %266 = arith.mulf %262, %265 : vector<8x1xf32>
    %267 = arith.mulf %259, %266 : vector<8x1xf32>
    %268 = arith.mulf %267, %256 : vector<8x1xf32>
    %269 = arith.subf %261, %268 : vector<8x1xf32>
    %270 = tpu.reciprocal %269 {approx = true} : vector<8x1xf32> -> vector<8x1xf32>
    %271 = arith.mulf %269, %270 : vector<8x1xf32>
    %cst_49 = arith.constant 2.000000e+00 : f32
    %272 = vector.broadcast %cst_49 : f32 to vector<8x1xf32>
    %273 = arith.subf %272, %271 : vector<8x1xf32>
    %274 = arith.mulf %270, %273 : vector<8x1xf32>
    %275 = vector.broadcast %125 : vector<8x1xf32> to vector<8x256xf32>
    %276 = arith.mulf %275, %13 : vector<8x256xf32>
    %277 = arith.subf %14, %276 : vector<8x256xf32>
    %278 = vector.broadcast %136 : vector<8x1xf32> to vector<8x256xf32>
    %279 = arith.mulf %278, %13 : vector<8x256xf32>
    %280 = arith.subf %15, %279 : vector<8x256xf32>
    %281 = vector.broadcast %147 : vector<8x1xf32> to vector<8x256xf32>
    %282 = arith.mulf %281, %13 : vector<8x256xf32>
    %283 = arith.subf %16, %282 : vector<8x256xf32>
    %284 = vector.broadcast %158 : vector<8x1xf32> to vector<8x256xf32>
    %285 = arith.mulf %284, %13 : vector<8x256xf32>
    %286 = arith.subf %17, %285 : vector<8x256xf32>
    %287 = vector.broadcast %169 : vector<8x1xf32> to vector<8x256xf32>
    %288 = arith.mulf %287, %13 : vector<8x256xf32>
    %289 = arith.subf %18, %288 : vector<8x256xf32>
    %290 = vector.broadcast %185 : vector<8x1xf32> to vector<8x256xf32>
    %291 = arith.mulf %290, %277 : vector<8x256xf32>
    %292 = arith.subf %280, %291 : vector<8x256xf32>
    %293 = vector.broadcast %194 : vector<8x1xf32> to vector<8x256xf32>
    %294 = arith.mulf %293, %277 : vector<8x256xf32>
    %295 = arith.subf %283, %294 : vector<8x256xf32>
    %296 = vector.broadcast %203 : vector<8x1xf32> to vector<8x256xf32>
    %297 = arith.mulf %296, %277 : vector<8x256xf32>
    %298 = arith.subf %286, %297 : vector<8x256xf32>
    %299 = vector.broadcast %212 : vector<8x1xf32> to vector<8x256xf32>
    %300 = arith.mulf %299, %277 : vector<8x256xf32>
    %301 = arith.subf %289, %300 : vector<8x256xf32>
    %302 = vector.broadcast %226 : vector<8x1xf32> to vector<8x256xf32>
    %303 = arith.mulf %302, %292 : vector<8x256xf32>
    %304 = arith.subf %295, %303 : vector<8x256xf32>
    %305 = vector.broadcast %233 : vector<8x1xf32> to vector<8x256xf32>
    %306 = arith.mulf %305, %292 : vector<8x256xf32>
    %307 = arith.subf %298, %306 : vector<8x256xf32>
    %308 = vector.broadcast %240 : vector<8x1xf32> to vector<8x256xf32>
    %309 = arith.mulf %308, %292 : vector<8x256xf32>
    %310 = arith.subf %301, %309 : vector<8x256xf32>
    %311 = vector.broadcast %252 : vector<8x1xf32> to vector<8x256xf32>
    %312 = arith.mulf %311, %304 : vector<8x256xf32>
    %313 = arith.subf %307, %312 : vector<8x256xf32>
    %314 = vector.broadcast %257 : vector<8x1xf32> to vector<8x256xf32>
    %315 = arith.mulf %314, %304 : vector<8x256xf32>
    %316 = arith.subf %310, %315 : vector<8x256xf32>
    %317 = vector.broadcast %267 : vector<8x1xf32> to vector<8x256xf32>
    %318 = arith.mulf %317, %313 : vector<8x256xf32>
    %319 = arith.subf %316, %318 : vector<8x256xf32>
    %320 = vector.broadcast %274 : vector<8x1xf32> to vector<8x256xf32>
    %321 = arith.mulf %319, %320 : vector<8x256xf32>
    %322 = vector.broadcast %256 : vector<8x1xf32> to vector<8x256xf32>
    %323 = arith.mulf %322, %321 : vector<8x256xf32>
    %324 = arith.subf %313, %323 : vector<8x256xf32>
    %325 = vector.broadcast %266 : vector<8x1xf32> to vector<8x256xf32>
    %326 = arith.mulf %324, %325 : vector<8x256xf32>
    %327 = vector.broadcast %230 : vector<8x1xf32> to vector<8x256xf32>
    %328 = arith.mulf %327, %326 : vector<8x256xf32>
    %329 = arith.subf %304, %328 : vector<8x256xf32>
    %330 = vector.broadcast %232 : vector<8x1xf32> to vector<8x256xf32>
    %331 = arith.mulf %330, %321 : vector<8x256xf32>
    %332 = arith.subf %329, %331 : vector<8x256xf32>
    %333 = vector.broadcast %251 : vector<8x1xf32> to vector<8x256xf32>
    %334 = arith.mulf %332, %333 : vector<8x256xf32>
    %335 = vector.broadcast %189 : vector<8x1xf32> to vector<8x256xf32>
    %336 = arith.mulf %335, %334 : vector<8x256xf32>
    %337 = arith.subf %292, %336 : vector<8x256xf32>
    %338 = vector.broadcast %191 : vector<8x1xf32> to vector<8x256xf32>
    %339 = arith.mulf %338, %326 : vector<8x256xf32>
    %340 = arith.subf %337, %339 : vector<8x256xf32>
    %341 = vector.broadcast %193 : vector<8x1xf32> to vector<8x256xf32>
    %342 = arith.mulf %341, %321 : vector<8x256xf32>
    %343 = arith.subf %340, %342 : vector<8x256xf32>
    %344 = vector.broadcast %225 : vector<8x1xf32> to vector<8x256xf32>
    %345 = arith.mulf %343, %344 : vector<8x256xf32>
    %346 = vector.broadcast %129 : vector<8x1xf32> to vector<8x256xf32>
    %347 = arith.mulf %346, %345 : vector<8x256xf32>
    %348 = arith.subf %277, %347 : vector<8x256xf32>
    %349 = vector.broadcast %131 : vector<8x1xf32> to vector<8x256xf32>
    %350 = arith.mulf %349, %334 : vector<8x256xf32>
    %351 = arith.subf %348, %350 : vector<8x256xf32>
    %352 = vector.broadcast %133 : vector<8x1xf32> to vector<8x256xf32>
    %353 = arith.mulf %352, %326 : vector<8x256xf32>
    %354 = arith.subf %351, %353 : vector<8x256xf32>
    %355 = vector.broadcast %135 : vector<8x1xf32> to vector<8x256xf32>
    %356 = arith.mulf %355, %321 : vector<8x256xf32>
    %357 = arith.subf %354, %356 : vector<8x256xf32>
    %358 = vector.broadcast %184 : vector<8x1xf32> to vector<8x256xf32>
    %359 = arith.mulf %357, %358 : vector<8x256xf32>
    %360 = vector.broadcast %52 : vector<8x1xf32> to vector<8x256xf32>
    %361 = arith.mulf %360, %359 : vector<8x256xf32>
    %362 = arith.subf %13, %361 : vector<8x256xf32>
    %363 = vector.broadcast %55 : vector<8x1xf32> to vector<8x256xf32>
    %364 = arith.mulf %363, %345 : vector<8x256xf32>
    %365 = arith.subf %362, %364 : vector<8x256xf32>
    %366 = vector.broadcast %58 : vector<8x1xf32> to vector<8x256xf32>
    %367 = arith.mulf %366, %334 : vector<8x256xf32>
    %368 = arith.subf %365, %367 : vector<8x256xf32>
    %369 = vector.broadcast %61 : vector<8x1xf32> to vector<8x256xf32>
    %370 = arith.mulf %369, %326 : vector<8x256xf32>
    %371 = arith.subf %368, %370 : vector<8x256xf32>
    %372 = vector.broadcast %64 : vector<8x1xf32> to vector<8x256xf32>
    %373 = arith.mulf %372, %321 : vector<8x256xf32>
    %374 = arith.subf %371, %373 : vector<8x256xf32>
    %375 = vector.broadcast %124 : vector<8x1xf32> to vector<8x256xf32>
    %376 = arith.mulf %374, %375 : vector<8x256xf32>
    %c0_50 = arith.constant 0 : index
    %c0_51 = arith.constant 0 : index
    %377 = vector.load %arg4[%c0_50, %c0_51] : memref<8x6xf32, #tpu.memory_space<vmem>>, vector<8x6xf32>
    %378 = vector.extract_strided_slice %377 {offsets = [0, 0], sizes = [8, 1], strides = [1, 1]} : vector<8x6xf32> to vector<8x1xf32>
    %379 = vector.extract_strided_slice %377 {offsets = [0, 1], sizes = [8, 1], strides = [1, 1]} : vector<8x6xf32> to vector<8x1xf32>
    %380 = vector.extract_strided_slice %377 {offsets = [0, 2], sizes = [8, 1], strides = [1, 1]} : vector<8x6xf32> to vector<8x1xf32>
    %381 = vector.extract_strided_slice %377 {offsets = [0, 3], sizes = [8, 1], strides = [1, 1]} : vector<8x6xf32> to vector<8x1xf32>
    %382 = vector.extract_strided_slice %377 {offsets = [0, 4], sizes = [8, 1], strides = [1, 1]} : vector<8x6xf32> to vector<8x1xf32>
    %383 = vector.extract_strided_slice %377 {offsets = [0, 5], sizes = [8, 1], strides = [1, 1]} : vector<8x6xf32> to vector<8x1xf32>
    %384 = vector.broadcast %378 : vector<8x1xf32> to vector<8x256xf32>
    %385 = arith.mulf %2, %384 : vector<8x256xf32>
    %386 = arith.addf %44, %385 : vector<8x256xf32>
    %387 = vector.broadcast %379 : vector<8x1xf32> to vector<8x256xf32>
    %388 = arith.mulf %4, %387 : vector<8x256xf32>
    %389 = arith.addf %386, %388 : vector<8x256xf32>
    %390 = vector.broadcast %380 : vector<8x1xf32> to vector<8x256xf32>
    %391 = arith.mulf %6, %390 : vector<8x256xf32>
    %392 = arith.addf %389, %391 : vector<8x256xf32>
    %393 = vector.broadcast %381 : vector<8x1xf32> to vector<8x256xf32>
    %394 = arith.mulf %8, %393 : vector<8x256xf32>
    %395 = arith.addf %392, %394 : vector<8x256xf32>
    %396 = vector.broadcast %382 : vector<8x1xf32> to vector<8x256xf32>
    %397 = arith.mulf %10, %396 : vector<8x256xf32>
    %398 = arith.addf %395, %397 : vector<8x256xf32>
    %399 = vector.broadcast %383 : vector<8x1xf32> to vector<8x256xf32>
    %400 = arith.mulf %12, %399 : vector<8x256xf32>
    %401 = arith.addf %398, %400 : vector<8x256xf32>
    %402 = arith.mulf %376, %401 : vector<8x256xf32>
    %cst_52 = arith.constant dense<0.000000e+00> : vector<8xf32>
    %403 = vector.multi_reduction <add>, %402, %cst_52 [1] : vector<8x256xf32> to vector<8xf32>
    %404 = vector.shape_cast %403 : vector<8xf32> to vector<8x1xf32>
    %405 = arith.subf %378, %404 : vector<8x1xf32>
    %406 = arith.mulf %359, %401 : vector<8x256xf32>
    %cst_53 = arith.constant dense<0.000000e+00> : vector<8xf32>
    %407 = vector.multi_reduction <add>, %406, %cst_53 [1] : vector<8x256xf32> to vector<8xf32>
    %408 = vector.shape_cast %407 : vector<8xf32> to vector<8x1xf32>
    %409 = arith.subf %379, %408 : vector<8x1xf32>
    %410 = arith.mulf %345, %401 : vector<8x256xf32>
    %cst_54 = arith.constant dense<0.000000e+00> : vector<8xf32>
    %411 = vector.multi_reduction <add>, %410, %cst_54 [1] : vector<8x256xf32> to vector<8xf32>
    %412 = vector.shape_cast %411 : vector<8xf32> to vector<8x1xf32>
    %413 = arith.subf %380, %412 : vector<8x1xf32>
    %414 = arith.mulf %334, %401 : vector<8x256xf32>
    %cst_55 = arith.constant dense<0.000000e+00> : vector<8xf32>
    %415 = vector.multi_reduction <add>, %414, %cst_55 [1] : vector<8x256xf32> to vector<8xf32>
    %416 = vector.shape_cast %415 : vector<8xf32> to vector<8x1xf32>
    %417 = arith.subf %381, %416 : vector<8x1xf32>
    %418 = arith.mulf %326, %401 : vector<8x256xf32>
    %cst_56 = arith.constant dense<0.000000e+00> : vector<8xf32>
    %419 = vector.multi_reduction <add>, %418, %cst_56 [1] : vector<8x256xf32> to vector<8xf32>
    %420 = vector.shape_cast %419 : vector<8xf32> to vector<8x1xf32>
    %421 = arith.subf %382, %420 : vector<8x1xf32>
    %422 = arith.mulf %321, %401 : vector<8x256xf32>
    %cst_57 = arith.constant dense<0.000000e+00> : vector<8xf32>
    %423 = vector.multi_reduction <add>, %422, %cst_57 [1] : vector<8x256xf32> to vector<8xf32>
    %424 = vector.shape_cast %423 : vector<8xf32> to vector<8x1xf32>
    %425 = arith.subf %383, %424 : vector<8x1xf32>
    %426 = vector.broadcast %405 : vector<8x1xf32> to vector<8x256xf32>
    %427 = arith.mulf %2, %426 : vector<8x256xf32>
    %428 = arith.addf %44, %427 : vector<8x256xf32>
    %429 = vector.broadcast %409 : vector<8x1xf32> to vector<8x256xf32>
    %430 = arith.mulf %4, %429 : vector<8x256xf32>
    %431 = arith.addf %428, %430 : vector<8x256xf32>
    %432 = vector.broadcast %413 : vector<8x1xf32> to vector<8x256xf32>
    %433 = arith.mulf %6, %432 : vector<8x256xf32>
    %434 = arith.addf %431, %433 : vector<8x256xf32>
    %435 = vector.broadcast %417 : vector<8x1xf32> to vector<8x256xf32>
    %436 = arith.mulf %8, %435 : vector<8x256xf32>
    %437 = arith.addf %434, %436 : vector<8x256xf32>
    %438 = vector.broadcast %421 : vector<8x1xf32> to vector<8x256xf32>
    %439 = arith.mulf %10, %438 : vector<8x256xf32>
    %440 = arith.addf %437, %439 : vector<8x256xf32>
    %441 = vector.broadcast %425 : vector<8x1xf32> to vector<8x256xf32>
    %442 = arith.mulf %12, %441 : vector<8x256xf32>
    %443 = arith.addf %440, %442 : vector<8x256xf32>
    %444 = arith.mulf %376, %443 : vector<8x256xf32>
    %cst_58 = arith.constant dense<0.000000e+00> : vector<8xf32>
    %445 = vector.multi_reduction <add>, %444, %cst_58 [1] : vector<8x256xf32> to vector<8xf32>
    %446 = vector.shape_cast %445 : vector<8xf32> to vector<8x1xf32>
    %447 = arith.subf %405, %446 : vector<8x1xf32>
    %448 = arith.mulf %359, %443 : vector<8x256xf32>
    %cst_59 = arith.constant dense<0.000000e+00> : vector<8xf32>
    %449 = vector.multi_reduction <add>, %448, %cst_59 [1] : vector<8x256xf32> to vector<8xf32>
    %450 = vector.shape_cast %449 : vector<8xf32> to vector<8x1xf32>
    %451 = arith.subf %409, %450 : vector<8x1xf32>
    %452 = arith.mulf %345, %443 : vector<8x256xf32>
    %cst_60 = arith.constant dense<0.000000e+00> : vector<8xf32>
    %453 = vector.multi_reduction <add>, %452, %cst_60 [1] : vector<8x256xf32> to vector<8xf32>
    %454 = vector.shape_cast %453 : vector<8xf32> to vector<8x1xf32>
    %455 = arith.subf %413, %454 : vector<8x1xf32>
    %456 = arith.mulf %334, %443 : vector<8x256xf32>
    %cst_61 = arith.constant dense<0.000000e+00> : vector<8xf32>
    %457 = vector.multi_reduction <add>, %456, %cst_61 [1] : vector<8x256xf32> to vector<8xf32>
    %458 = vector.shape_cast %457 : vector<8xf32> to vector<8x1xf32>
    %459 = arith.subf %417, %458 : vector<8x1xf32>
    %460 = arith.mulf %326, %443 : vector<8x256xf32>
    %cst_62 = arith.constant dense<0.000000e+00> : vector<8xf32>
    %461 = vector.multi_reduction <add>, %460, %cst_62 [1] : vector<8x256xf32> to vector<8xf32>
    %462 = vector.shape_cast %461 : vector<8xf32> to vector<8x1xf32>
    %463 = arith.subf %421, %462 : vector<8x1xf32>
    %464 = arith.mulf %321, %443 : vector<8x256xf32>
    %cst_63 = arith.constant dense<0.000000e+00> : vector<8xf32>
    %465 = vector.multi_reduction <add>, %464, %cst_63 [1] : vector<8x256xf32> to vector<8xf32>
    %466 = vector.shape_cast %465 : vector<8xf32> to vector<8x1xf32>
    %467 = arith.subf %425, %466 : vector<8x1xf32>
    %468 = vector.broadcast %447 : vector<8x1xf32> to vector<8x256xf32>
    %469 = arith.mulf %2, %468 : vector<8x256xf32>
    %470 = arith.addf %44, %469 : vector<8x256xf32>
    %471 = vector.broadcast %451 : vector<8x1xf32> to vector<8x256xf32>
    %472 = arith.mulf %4, %471 : vector<8x256xf32>
    %473 = arith.addf %470, %472 : vector<8x256xf32>
    %474 = vector.broadcast %455 : vector<8x1xf32> to vector<8x256xf32>
    %475 = arith.mulf %6, %474 : vector<8x256xf32>
    %476 = arith.addf %473, %475 : vector<8x256xf32>
    %477 = vector.broadcast %459 : vector<8x1xf32> to vector<8x256xf32>
    %478 = arith.mulf %8, %477 : vector<8x256xf32>
    %479 = arith.addf %476, %478 : vector<8x256xf32>
    %480 = vector.broadcast %463 : vector<8x1xf32> to vector<8x256xf32>
    %481 = arith.mulf %10, %480 : vector<8x256xf32>
    %482 = arith.addf %479, %481 : vector<8x256xf32>
    %483 = vector.broadcast %467 : vector<8x1xf32> to vector<8x256xf32>
    %484 = arith.mulf %12, %483 : vector<8x256xf32>
    %485 = arith.addf %482, %484 : vector<8x256xf32>
    %486 = arith.mulf %376, %485 : vector<8x256xf32>
    %cst_64 = arith.constant dense<0.000000e+00> : vector<8xf32>
    %487 = vector.multi_reduction <add>, %486, %cst_64 [1] : vector<8x256xf32> to vector<8xf32>
    %488 = vector.shape_cast %487 : vector<8xf32> to vector<8x1xf32>
    %489 = arith.subf %447, %488 : vector<8x1xf32>
    %490 = arith.mulf %359, %485 : vector<8x256xf32>
    %cst_65 = arith.constant dense<0.000000e+00> : vector<8xf32>
    %491 = vector.multi_reduction <add>, %490, %cst_65 [1] : vector<8x256xf32> to vector<8xf32>
    %492 = vector.shape_cast %491 : vector<8xf32> to vector<8x1xf32>
    %493 = arith.subf %451, %492 : vector<8x1xf32>
    %494 = arith.mulf %345, %485 : vector<8x256xf32>
    %cst_66 = arith.constant dense<0.000000e+00> : vector<8xf32>
    %495 = vector.multi_reduction <add>, %494, %cst_66 [1] : vector<8x256xf32> to vector<8xf32>
    %496 = vector.shape_cast %495 : vector<8xf32> to vector<8x1xf32>
    %497 = arith.subf %455, %496 : vector<8x1xf32>
    %498 = arith.mulf %334, %485 : vector<8x256xf32>
    %cst_67 = arith.constant dense<0.000000e+00> : vector<8xf32>
    %499 = vector.multi_reduction <add>, %498, %cst_67 [1] : vector<8x256xf32> to vector<8xf32>
    %500 = vector.shape_cast %499 : vector<8xf32> to vector<8x1xf32>
    %501 = arith.subf %459, %500 : vector<8x1xf32>
    %502 = arith.mulf %326, %485 : vector<8x256xf32>
    %cst_68 = arith.constant dense<0.000000e+00> : vector<8xf32>
    %503 = vector.multi_reduction <add>, %502, %cst_68 [1] : vector<8x256xf32> to vector<8xf32>
    %504 = vector.shape_cast %503 : vector<8xf32> to vector<8x1xf32>
    %505 = arith.subf %463, %504 : vector<8x1xf32>
    %506 = arith.mulf %321, %485 : vector<8x256xf32>
    %cst_69 = arith.constant dense<0.000000e+00> : vector<8xf32>
    %507 = vector.multi_reduction <add>, %506, %cst_69 [1] : vector<8x256xf32> to vector<8xf32>
    %508 = vector.shape_cast %507 : vector<8xf32> to vector<8x1xf32>
    %509 = arith.subf %467, %508 : vector<8x1xf32>
    %510 = vector.broadcast %489 : vector<8x1xf32> to vector<8x256xf32>
    %511 = arith.mulf %2, %510 : vector<8x256xf32>
    %512 = arith.addf %44, %511 : vector<8x256xf32>
    %513 = vector.broadcast %493 : vector<8x1xf32> to vector<8x256xf32>
    %514 = arith.mulf %4, %513 : vector<8x256xf32>
    %515 = arith.addf %512, %514 : vector<8x256xf32>
    %516 = vector.broadcast %497 : vector<8x1xf32> to vector<8x256xf32>
    %517 = arith.mulf %6, %516 : vector<8x256xf32>
    %518 = arith.addf %515, %517 : vector<8x256xf32>
    %519 = vector.broadcast %501 : vector<8x1xf32> to vector<8x256xf32>
    %520 = arith.mulf %8, %519 : vector<8x256xf32>
    %521 = arith.addf %518, %520 : vector<8x256xf32>
    %522 = vector.broadcast %505 : vector<8x1xf32> to vector<8x256xf32>
    %523 = arith.mulf %10, %522 : vector<8x256xf32>
    %524 = arith.addf %521, %523 : vector<8x256xf32>
    %525 = vector.broadcast %509 : vector<8x1xf32> to vector<8x256xf32>
    %526 = arith.mulf %12, %525 : vector<8x256xf32>
    %527 = arith.addf %524, %526 : vector<8x256xf32>
    %528 = arith.mulf %376, %527 : vector<8x256xf32>
    %cst_70 = arith.constant dense<0.000000e+00> : vector<8xf32>
    %529 = vector.multi_reduction <add>, %528, %cst_70 [1] : vector<8x256xf32> to vector<8xf32>
    %530 = vector.shape_cast %529 : vector<8xf32> to vector<8x1xf32>
    %531 = arith.subf %489, %530 : vector<8x1xf32>
    %532 = arith.mulf %359, %527 : vector<8x256xf32>
    %cst_71 = arith.constant dense<0.000000e+00> : vector<8xf32>
    %533 = vector.multi_reduction <add>, %532, %cst_71 [1] : vector<8x256xf32> to vector<8xf32>
    %534 = vector.shape_cast %533 : vector<8xf32> to vector<8x1xf32>
    %535 = arith.subf %493, %534 : vector<8x1xf32>
    %536 = arith.mulf %345, %527 : vector<8x256xf32>
    %cst_72 = arith.constant dense<0.000000e+00> : vector<8xf32>
    %537 = vector.multi_reduction <add>, %536, %cst_72 [1] : vector<8x256xf32> to vector<8xf32>
    %538 = vector.shape_cast %537 : vector<8xf32> to vector<8x1xf32>
    %539 = arith.subf %497, %538 : vector<8x1xf32>
    %540 = arith.mulf %334, %527 : vector<8x256xf32>
    %cst_73 = arith.constant dense<0.000000e+00> : vector<8xf32>
    %541 = vector.multi_reduction <add>, %540, %cst_73 [1] : vector<8x256xf32> to vector<8xf32>
    %542 = vector.shape_cast %541 : vector<8xf32> to vector<8x1xf32>
    %543 = arith.subf %501, %542 : vector<8x1xf32>
    %544 = arith.mulf %326, %527 : vector<8x256xf32>
    %cst_74 = arith.constant dense<0.000000e+00> : vector<8xf32>
    %545 = vector.multi_reduction <add>, %544, %cst_74 [1] : vector<8x256xf32> to vector<8xf32>
    %546 = vector.shape_cast %545 : vector<8xf32> to vector<8x1xf32>
    %547 = arith.subf %505, %546 : vector<8x1xf32>
    %548 = arith.mulf %321, %527 : vector<8x256xf32>
    %cst_75 = arith.constant dense<0.000000e+00> : vector<8xf32>
    %549 = vector.multi_reduction <add>, %548, %cst_75 [1] : vector<8x256xf32> to vector<8xf32>
    %550 = vector.shape_cast %549 : vector<8xf32> to vector<8x1xf32>
    %551 = arith.subf %509, %550 : vector<8x1xf32>
    %552 = vector.broadcast %531 : vector<8x1xf32> to vector<8x256xf32>
    %553 = arith.mulf %2, %552 : vector<8x256xf32>
    %554 = arith.addf %44, %553 : vector<8x256xf32>
    %555 = vector.broadcast %535 : vector<8x1xf32> to vector<8x256xf32>
    %556 = arith.mulf %4, %555 : vector<8x256xf32>
    %557 = arith.addf %554, %556 : vector<8x256xf32>
    %558 = vector.broadcast %539 : vector<8x1xf32> to vector<8x256xf32>
    %559 = arith.mulf %6, %558 : vector<8x256xf32>
    %560 = arith.addf %557, %559 : vector<8x256xf32>
    %561 = vector.broadcast %543 : vector<8x1xf32> to vector<8x256xf32>
    %562 = arith.mulf %8, %561 : vector<8x256xf32>
    %563 = arith.addf %560, %562 : vector<8x256xf32>
    %564 = vector.broadcast %547 : vector<8x1xf32> to vector<8x256xf32>
    %565 = arith.mulf %10, %564 : vector<8x256xf32>
    %566 = arith.addf %563, %565 : vector<8x256xf32>
    %567 = vector.broadcast %551 : vector<8x1xf32> to vector<8x256xf32>
    %568 = arith.mulf %12, %567 : vector<8x256xf32>
    %569 = arith.addf %566, %568 : vector<8x256xf32>
    %570 = arith.mulf %376, %569 : vector<8x256xf32>
    %cst_76 = arith.constant dense<0.000000e+00> : vector<8xf32>
    %571 = vector.multi_reduction <add>, %570, %cst_76 [1] : vector<8x256xf32> to vector<8xf32>
    %572 = vector.shape_cast %571 : vector<8xf32> to vector<8x1xf32>
    %573 = arith.subf %531, %572 : vector<8x1xf32>
    %574 = arith.mulf %359, %569 : vector<8x256xf32>
    %cst_77 = arith.constant dense<0.000000e+00> : vector<8xf32>
    %575 = vector.multi_reduction <add>, %574, %cst_77 [1] : vector<8x256xf32> to vector<8xf32>
    %576 = vector.shape_cast %575 : vector<8xf32> to vector<8x1xf32>
    %577 = arith.subf %535, %576 : vector<8x1xf32>
    %578 = arith.mulf %345, %569 : vector<8x256xf32>
    %cst_78 = arith.constant dense<0.000000e+00> : vector<8xf32>
    %579 = vector.multi_reduction <add>, %578, %cst_78 [1] : vector<8x256xf32> to vector<8xf32>
    %580 = vector.shape_cast %579 : vector<8xf32> to vector<8x1xf32>
    %581 = arith.subf %539, %580 : vector<8x1xf32>
    %582 = arith.mulf %334, %569 : vector<8x256xf32>
    %cst_79 = arith.constant dense<0.000000e+00> : vector<8xf32>
    %583 = vector.multi_reduction <add>, %582, %cst_79 [1] : vector<8x256xf32> to vector<8xf32>
    %584 = vector.shape_cast %583 : vector<8xf32> to vector<8x1xf32>
    %585 = arith.subf %543, %584 : vector<8x1xf32>
    %586 = arith.mulf %326, %569 : vector<8x256xf32>
    %cst_80 = arith.constant dense<0.000000e+00> : vector<8xf32>
    %587 = vector.multi_reduction <add>, %586, %cst_80 [1] : vector<8x256xf32> to vector<8xf32>
    %588 = vector.shape_cast %587 : vector<8xf32> to vector<8x1xf32>
    %589 = arith.subf %547, %588 : vector<8x1xf32>
    %590 = arith.mulf %321, %569 : vector<8x256xf32>
    %cst_81 = arith.constant dense<0.000000e+00> : vector<8xf32>
    %591 = vector.multi_reduction <add>, %590, %cst_81 [1] : vector<8x256xf32> to vector<8xf32>
    %592 = vector.shape_cast %591 : vector<8xf32> to vector<8x1xf32>
    %593 = arith.subf %551, %592 : vector<8x1xf32>
    %594 = vector.broadcast %573 : vector<8x1xf32> to vector<8x256xf32>
    %595 = arith.mulf %2, %594 : vector<8x256xf32>
    %596 = arith.addf %44, %595 : vector<8x256xf32>
    %597 = vector.broadcast %577 : vector<8x1xf32> to vector<8x256xf32>
    %598 = arith.mulf %4, %597 : vector<8x256xf32>
    %599 = arith.addf %596, %598 : vector<8x256xf32>
    %600 = vector.broadcast %581 : vector<8x1xf32> to vector<8x256xf32>
    %601 = arith.mulf %6, %600 : vector<8x256xf32>
    %602 = arith.addf %599, %601 : vector<8x256xf32>
    %603 = vector.broadcast %585 : vector<8x1xf32> to vector<8x256xf32>
    %604 = arith.mulf %8, %603 : vector<8x256xf32>
    %605 = arith.addf %602, %604 : vector<8x256xf32>
    %606 = vector.broadcast %589 : vector<8x1xf32> to vector<8x256xf32>
    %607 = arith.mulf %10, %606 : vector<8x256xf32>
    %608 = arith.addf %605, %607 : vector<8x256xf32>
    %609 = vector.broadcast %593 : vector<8x1xf32> to vector<8x256xf32>
    %610 = arith.mulf %12, %609 : vector<8x256xf32>
    %611 = arith.addf %608, %610 : vector<8x256xf32>
    %612 = arith.mulf %376, %611 : vector<8x256xf32>
    %cst_82 = arith.constant dense<0.000000e+00> : vector<8xf32>
    %613 = vector.multi_reduction <add>, %612, %cst_82 [1] : vector<8x256xf32> to vector<8xf32>
    %614 = vector.shape_cast %613 : vector<8xf32> to vector<8x1xf32>
    %615 = arith.subf %573, %614 : vector<8x1xf32>
    %616 = arith.mulf %359, %611 : vector<8x256xf32>
    %cst_83 = arith.constant dense<0.000000e+00> : vector<8xf32>
    %617 = vector.multi_reduction <add>, %616, %cst_83 [1] : vector<8x256xf32> to vector<8xf32>
    %618 = vector.shape_cast %617 : vector<8xf32> to vector<8x1xf32>
    %619 = arith.subf %577, %618 : vector<8x1xf32>
    %620 = arith.mulf %345, %611 : vector<8x256xf32>
    %cst_84 = arith.constant dense<0.000000e+00> : vector<8xf32>
    %621 = vector.multi_reduction <add>, %620, %cst_84 [1] : vector<8x256xf32> to vector<8xf32>
    %622 = vector.shape_cast %621 : vector<8xf32> to vector<8x1xf32>
    %623 = arith.subf %581, %622 : vector<8x1xf32>
    %624 = arith.mulf %334, %611 : vector<8x256xf32>
    %cst_85 = arith.constant dense<0.000000e+00> : vector<8xf32>
    %625 = vector.multi_reduction <add>, %624, %cst_85 [1] : vector<8x256xf32> to vector<8xf32>
    %626 = vector.shape_cast %625 : vector<8xf32> to vector<8x1xf32>
    %627 = arith.subf %585, %626 : vector<8x1xf32>
    %628 = arith.mulf %326, %611 : vector<8x256xf32>
    %cst_86 = arith.constant dense<0.000000e+00> : vector<8xf32>
    %629 = vector.multi_reduction <add>, %628, %cst_86 [1] : vector<8x256xf32> to vector<8xf32>
    %630 = vector.shape_cast %629 : vector<8xf32> to vector<8x1xf32>
    %631 = arith.subf %589, %630 : vector<8x1xf32>
    %632 = arith.mulf %321, %611 : vector<8x256xf32>
    %cst_87 = arith.constant dense<0.000000e+00> : vector<8xf32>
    %633 = vector.multi_reduction <add>, %632, %cst_87 [1] : vector<8x256xf32> to vector<8xf32>
    %634 = vector.shape_cast %633 : vector<8xf32> to vector<8x1xf32>
    %635 = arith.subf %593, %634 : vector<8x1xf32>
    %636 = tpu.iota {dimensions = array<i32: 1>} : vector<8x6xi32>
    %c0_i32 = arith.constant 0 : i32
    %637 = vector.broadcast %c0_i32 : i32 to vector<8x6xi32>
    %638 = arith.cmpi eq, %636, %637 : vector<8x6xi32>
    %639 = vector.shape_cast %615 : vector<8x1xf32> to vector<8x1xf32>
    %640 = vector.broadcast %639 : vector<8x1xf32> to vector<8x6xf32>
    %641 = arith.select %638, %640, %377 : vector<8x6xi1>, vector<8x6xf32>
    %c1_i32 = arith.constant 1 : i32
    %642 = vector.broadcast %c1_i32 : i32 to vector<8x6xi32>
    %643 = arith.cmpi eq, %636, %642 : vector<8x6xi32>
    %644 = vector.shape_cast %619 : vector<8x1xf32> to vector<8x1xf32>
    %645 = vector.broadcast %644 : vector<8x1xf32> to vector<8x6xf32>
    %646 = arith.select %643, %645, %641 : vector<8x6xi1>, vector<8x6xf32>
    %c2_i32 = arith.constant 2 : i32
    %647 = vector.broadcast %c2_i32 : i32 to vector<8x6xi32>
    %648 = arith.cmpi eq, %636, %647 : vector<8x6xi32>
    %649 = vector.shape_cast %623 : vector<8x1xf32> to vector<8x1xf32>
    %650 = vector.broadcast %649 : vector<8x1xf32> to vector<8x6xf32>
    %651 = arith.select %648, %650, %646 : vector<8x6xi1>, vector<8x6xf32>
    %c3_i32 = arith.constant 3 : i32
    %652 = vector.broadcast %c3_i32 : i32 to vector<8x6xi32>
    %653 = arith.cmpi eq, %636, %652 : vector<8x6xi32>
    %654 = vector.shape_cast %627 : vector<8x1xf32> to vector<8x1xf32>
    %655 = vector.broadcast %654 : vector<8x1xf32> to vector<8x6xf32>
    %656 = arith.select %653, %655, %651 : vector<8x6xi1>, vector<8x6xf32>
    %c4_i32 = arith.constant 4 : i32
    %657 = vector.broadcast %c4_i32 : i32 to vector<8x6xi32>
    %658 = arith.cmpi eq, %636, %657 : vector<8x6xi32>
    %659 = vector.shape_cast %631 : vector<8x1xf32> to vector<8x1xf32>
    %660 = vector.broadcast %659 : vector<8x1xf32> to vector<8x6xf32>
    %661 = arith.select %658, %660, %656 : vector<8x6xi1>, vector<8x6xf32>
    %c5_i32 = arith.constant 5 : i32
    %662 = vector.broadcast %c5_i32 : i32 to vector<8x6xi32>
    %663 = arith.cmpi eq, %636, %662 : vector<8x6xi32>
    %664 = vector.shape_cast %635 : vector<8x1xf32> to vector<8x1xf32>
    %665 = vector.broadcast %664 : vector<8x1xf32> to vector<8x6xf32>
    %666 = arith.select %663, %665, %661 : vector<8x6xi1>, vector<8x6xf32>
    %c0_88 = arith.constant 0 : index
    %c0_89 = arith.constant 0 : index
    %667 = vector.load %arg5[%c0_88, %c0_89] : memref<8x6xf32, #tpu.memory_space<vmem>>, vector<8x6xf32>
    tpu.vector_store %arg5[%c0_88, %c0_89], %666 {strides = array<i32>} : memref<8x6xf32, #tpu.memory_space<vmem>>, vector<8x6xf32>,
    return
  }
}

</mosaic_0001>

<llo_original>
// kernel: dense_ba.1
$region0: #{dense_ba.1}
  #allocation0 [shape = 'u32[]', space=smem, size = 0x4, offset = 0x4, fixed_abs, tag = 'smem constant byte address 0x4 - core index']
  #allocation1 [shape = 'u32[72,128]{1,0:T(1,128)}', space=vmem, size = 0x9000, scoped, tag = 'internal scratch']
  %s0 = inlined_call_operand.hbm [shape: f32[6,8,256], index: 0, kind: input, shape index: {}]
  %s1 = inlined_call_operand.vmem [shape: f32[8,256], index: 1, kind: input, shape index: {}]
  %s2 = inlined_call_operand.hbm [shape: f32[8,256], index: 2, kind: input, shape index: {}]
  %s3 = inlined_call_operand.hbm [shape: f32[8,6], index: 3, kind: input, shape index: {}]
  %s4 = inlined_call_operand.hbm [shape: f32[8,6], index: 4, kind: input, shape index: {}, may-alias: {4,5}]
  %s5 = inlined_call_operand.hbm [shape: f32[8,6], index: 5, kind: output, shape index: {}, may-alias: {4,5}]
  %s6 = sld [smem:[#allocation0]]
  $region46: #{dense_ba.1} parent=0
    _
  %s8 = ssub.s32 1, %s6
  %s9 = scalar_select 0, %s8, %s6
  $region1: #{dense_ba.1} parent=0
    #allocation2 [shape = 'u8[49152]{0}', space=vmem, size = 0xc000, scoped, tag = 'input window, operand 0, single buffered']
    #allocation3 [shape = 's32[1]{0}', space=sflag, size = 0x4, scoped, tag = 'scoped memory for dense_ba.1']
    #allocation4 [shape = 's32[1]{0}', space=sflag, size = 0x4, scoped, tag = 'scoped memory for dense_ba.1']
    #allocation5 [shape = 'u8[8192]{0}', space=vmem, size = 0x2000, scoped, tag = 'input window, operand 2, single buffered']
    #allocation6 [shape = 's32[1]{0}', space=sflag, size = 0x4, scoped, tag = 'scoped memory for dense_ba.1']
    #allocation7 [shape = 'u8[4096]{0}', space=vmem, size = 0x1000, scoped, tag = 'input window, operand 3, single buffered']
    #allocation8 [shape = 'u8[4096]{0}', space=vmem, size = 0x1000, scoped, tag = 'input window, operand 4, single buffered']
    #allocation9 [shape = 's32[1]{0}', space=sflag, size = 0x4, scoped, tag = 'scoped memory for dense_ba.1']
    #allocation10 [shape = 'u8[4096]{0}', space=vmem, size = 0x1000, scoped, tag = 'output window, operand 0, single buffered']
    %10 = vsyncpa [#allocation3], 0
    %11 = vsyncpa [#allocation6], 0
    %12 = vsyncpa [#allocation9], 0
    %13 = vsyncpa [#allocation4], 0
    // Predicated region
    $region2: #{dense_ba.1} parent=1 // pred_check
      _
    $region3: #{dense_ba.1} parent=1 // pred_check_branch
      %15 = sbr.rel (0) target = $region5
    $region4: #{dense_ba.1} parent=1 // pred_region
      %17 = vsyncadd [#allocation3], 0
      %s18 = sshll.u32 %s0, 4
      %s19 = int_to_ptr.hbm [resolvable:$true] %s18
      %s20 = sshll.u32 [#allocation2], 4
      %s21 = int_to_ptr.vmem [resolvable:$true] %s20
      %26 = dma.hbm_to_vmem [thread:$0]  %s19, 1536, %s21, [#allocation3], 256, 256, 16
    $region5: #{dense_ba.1} parent=1 // pred_fallthru
      _
    // Predicated region
    $region6: #{dense_ba.1} parent=1 // pred_check
      _
    $region7: #{dense_ba.1} parent=1 // pred_check_branch
      %28 = sbr.rel (0) target = $region9
    $region8: #{dense_ba.1} parent=1 // pred_region
      _
    $region9: #{dense_ba.1} parent=1 // pred_fallthru
      _
    // Predicated region
    $region10: #{dense_ba.1} parent=1 // pred_check
      _
    $region11: #{dense_ba.1} parent=1 // pred_check_branch
      %30 = sbr.rel (0) target = $region13
    $region12: #{dense_ba.1} parent=1 // pred_region
      %32 = vsyncadd [#allocation6], 0
      %s34 = sshll.u32 %s2, 4
      %s35 = int_to_ptr.hbm [resolvable:$true] %s34
      %s36 = sshll.u32 [#allocation5], 4
      %s37 = int_to_ptr.vmem [resolvable:$true] %s36
      %39 = dma.hbm_to_vmem [thread:$0]  %s35, 256, %s37, [#allocation6]
    $region13: #{dense_ba.1} parent=1 // pred_fallthru
      _
    // Predicated region
    $region14: #{dense_ba.1} parent=1 // pred_check
      _
    $region15: #{dense_ba.1} parent=1 // pred_check_branch
      %41 = sbr.rel (0) target = $region17
    $region16: #{dense_ba.1} parent=1 // pred_region
      %43 = vsyncadd [#allocation6], 0
      %s45 = sshll.u32 %s3, 4
      %s46 = int_to_ptr.hbm [resolvable:$true] %s45
      %s47 = sshll.u32 [#allocation7], 4
      %s48 = int_to_ptr.vmem [resolvable:$true] %s47
      %50 = dma.hbm_to_vmem [thread:$0]  %s46, 128, %s48, [#allocation6]
    $region17: #{dense_ba.1} parent=1 // pred_fallthru
      _
    // Predicated region
    $region18: #{dense_ba.1} parent=1 // pred_check
      _
    $region19: #{dense_ba.1} parent=1 // pred_check_branch
      %52 = sbr.rel (0) target = $region21
    $region20: #{dense_ba.1} parent=1 // pred_region
      %54 = vsyncadd [#allocation9], 0
      %s56 = sshll.u32 %s4, 4
      %s57 = int_to_ptr.hbm [resolvable:$true] %s56
      %s58 = sshll.u32 [#allocation8], 4
      %s59 = int_to_ptr.vmem [resolvable:$true] %s58
      %61 = dma.hbm_to_vmem [thread:$0]  %s57, 128, %s59, [#allocation9]
    $region21: #{dense_ba.1} parent=1 // pred_fallthru
      _
    // Predicated region
    $region22: #{dense_ba.1} parent=1 // pred_check
      _
    $region23: #{dense_ba.1} parent=1 // pred_check_branch
      %63 = sbr.rel (0) target = $region25
    $region24: #{dense_ba.1} parent=1 // pred_region
      %65 = dma.done [#allocation3], 1536
    $region25: #{dense_ba.1} parent=1 // pred_fallthru
      _
    // Predicated region
    $region26: #{dense_ba.1} parent=1 // pred_check
      _
    $region27: #{dense_ba.1} parent=1 // pred_check_branch
      %67 = sbr.rel (0) target = $region29
    $region28: #{dense_ba.1} parent=1 // pred_region
      %69 = dma.done [#allocation6], 256
    $region29: #{dense_ba.1} parent=1 // pred_fallthru
      _
    // Predicated region
    $region30: #{dense_ba.1} parent=1 // pred_check
      _
    $region31: #{dense_ba.1} parent=1 // pred_check_branch
      %71 = sbr.rel (0) target = $region33
    $region32: #{dense_ba.1} parent=1 // pred_region
      %73 = dma.done [#allocation6], 128
    $region33: #{dense_ba.1} parent=1 // pred_fallthru
      _
    // Predicated region
    $region34: #{dense_ba.1} parent=1 // pred_check
      _
    $region35: #{dense_ba.1} parent=1 // pred_check_branch
      %75 = sbr.rel (0) target = $region37
    $region36: #{dense_ba.1} parent=1 // pred_region
      %77 = dma.done [#allocation9], 128
    $region37: #{dense_ba.1} parent=1 // pred_fallthru
      _
    %v78 = vld [vmem:[#allocation5] sm:$0xff]
    %v79 = vld [vmem:[#allocation5 + $0x8] sm:$0xff]
    %v80 = vld [vmem:[#allocation2] sm:$0xff]
    %v81 = vld [vmem:[#allocation2 + $0x8] sm:$0xff]
    %s82 = scalar_lea.vmem [#allocation2], 16
    %v83 = vld [vmem:[%s82] sm:$0xff]
    %v84 = vld [vmem:[%s82 + $0x8] sm:$0xff]
    %s85 = scalar_lea.vmem [#allocation2], 32
    %v86 = vld [vmem:[%s85] sm:$0xff]
    %v87 = vld [vmem:[%s85 + $0x8] sm:$0xff]
    %s88 = scalar_lea.vmem [#allocation2], 48
    %v89 = vld [vmem:[%s88] sm:$0xff]
    %v90 = vld [vmem:[%s88 + $0x8] sm:$0xff]
    %s91 = scalar_lea.vmem [#allocation2], 64
    %v92 = vld [vmem:[%s91] sm:$0xff]
    %v93 = vld [vmem:[%s91 + $0x8] sm:$0xff]
    %s94 = scalar_lea.vmem [#allocation2], 80
    %v95 = vld [vmem:[%s94] sm:$0xff]
    %v96 = vld [vmem:[%s94 + $0x8] sm:$0xff]
    %v97 = vmul.f32 %v80, %v78
    %v98 = vmul.f32 %v81, %v79
    %v99 = vmul.f32 %v83, %v78
    %v100 = vmul.f32 %v84, %v79
    %v101 = vmul.f32 %v86, %v78
    %v102 = vmul.f32 %v87, %v79
    %v103 = vmul.f32 %v89, %v78
    %v104 = vmul.f32 %v90, %v79
    %v105 = vmul.f32 %v92, %v78
    %v106 = vmul.f32 %v93, %v79
    %v107 = vmul.f32 %v95, %v78
    %v108 = vmul.f32 %v96, %v79
    %v109 = vld [vmem:[#allocation7] sm:$0xff]
    %v110 = vld [vmem:[%s1] sm:$0xff]
    %v111 = vld [vmem:[%s1 + $0x8] sm:$0xff]
    %113 = vset.pattern.permute.xlu0 0
    %114 = vperm.xlu0 %113, %v109
    %v115 = vpop.permute.xlu0 %114
    %v117 = vmul.f32 %v80, %v115
    %v118 = vmul.f32 %v81, %v115
    %v119 = vsub.f32 %v110, %v117
    %v120 = vsub.f32 %v111, %v118
    %121 = vset.pattern.permute.xlu0 1
    %122 = vperm.xlu0 %121, %v109
    %v123 = vpop.permute.xlu0 %122
    %v125 = vmul.f32 %v83, %v123
    %v126 = vmul.f32 %v84, %v123
    %v127 = vsub.f32 %v119, %v125
    %v128 = vsub.f32 %v120, %v126
    %129 = vset.pattern.permute.xlu0 2
    %130 = vperm.xlu0 %129, %v109
    %v131 = vpop.permute.xlu0 %130
    %v133 = vmul.f32 %v86, %v131
    %v134 = vmul.f32 %v87, %v131
    %v135 = vsub.f32 %v127, %v133
    %v136 = vsub.f32 %v128, %v134
    %137 = vset.pattern.permute.xlu0 3
    %138 = vperm.xlu0 %137, %v109
    %v139 = vpop.permute.xlu0 %138
    %v141 = vmul.f32 %v89, %v139
    %v142 = vmul.f32 %v90, %v139
    %v143 = vsub.f32 %v135, %v141
    %v144 = vsub.f32 %v136, %v142
    %145 = vset.pattern.permute.xlu0 4
    %146 = vperm.xlu0 %145, %v109
    %v147 = vpop.permute.xlu0 %146
    %v149 = vmul.f32 %v92, %v147
    %v150 = vmul.f32 %v93, %v147
    %v151 = vsub.f32 %v143, %v149
    %v152 = vsub.f32 %v144, %v150
    %153 = vset.pattern.permute.xlu0 5
    %154 = vperm.xlu0 %153, %v109
    %v155 = vpop.permute.xlu0 %154
    %v157 = vmul.f32 %v95, %v155
    %v158 = vmul.f32 %v96, %v155
    %v159 = vsub.f32 %v151, %v157
    %v160 = vsub.f32 %v152, %v158
    %v161 = vmul.f32 %v97, %v80
    %v162 = vmul.f32 %v98, %v81
    %v163 = vadd.f32 %v161, %v162
    %164 = vadd.xlane.f32.xlu0 %v163
    %v165 = vpop.xlane.xlu0 %164
    %v166 = vadd.f32 %v165, 0.001
    %v167 = vmul.f32 %v97, %v83
    %v168 = vmul.f32 %v98, %v84
    %v169 = vadd.f32 %v167, %v168
    %170 = vadd.xlane.f32.xlu0 %v169
    %v171 = vpop.xlane.xlu0 %170
    %v172 = vmul.f32 %v97, %v86
    %v173 = vmul.f32 %v98, %v87
    %v174 = vadd.f32 %v172, %v173
    %175 = vadd.xlane.f32.xlu0 %v174
    %v176 = vpop.xlane.xlu0 %175
    %v177 = vmul.f32 %v97, %v89
    %v178 = vmul.f32 %v98, %v90
    %v179 = vadd.f32 %v177, %v178
    %180 = vadd.xlane.f32.xlu0 %v179
    %v181 = vpop.xlane.xlu0 %180
    %v182 = vmul.f32 %v97, %v92
    %v183 = vmul.f32 %v98, %v93
    %v184 = vadd.f32 %v182, %v183
    %185 = vadd.xlane.f32.xlu0 %v184
    %v186 = vpop.xlane.xlu0 %185
    %v187 = vmul.f32 %v97, %v95
    %v188 = vmul.f32 %v98, %v96
    %v189 = vadd.f32 %v187, %v188
    %190 = vadd.xlane.f32.xlu0 %v189
    %v191 = vpop.xlane.xlu0 %190
    %v192 = vmul.f32 %v99, %v83
    %v193 = vmul.f32 %v100, %v84
    %v194 = vadd.f32 %v192, %v193
    %195 = vadd.xlane.f32.xlu0 %v194
    %v196 = vpop.xlane.xlu0 %195
    %v197 = vadd.f32 %v196, 0.001
    %v198 = vmul.f32 %v99, %v86
    %v199 = vmul.f32 %v100, %v87
    %v200 = vadd.f32 %v198, %v199
    %201 = vadd.xlane.f32.xlu0 %v200
    %v202 = vpop.xlane.xlu0 %201
    %v203 = vmul.f32 %v99, %v89
    %v204 = vmul.f32 %v100, %v90
    %v205 = vadd.f32 %v203, %v204
    %206 = vadd.xlane.f32.xlu0 %v205
    %v207 = vpop.xlane.xlu0 %206
    %v208 = vmul.f32 %v99, %v92
    %v209 = vmul.f32 %v100, %v93
    %v210 = vadd.f32 %v208, %v209
    %211 = vadd.xlane.f32.xlu0 %v210
    %v212 = vpop.xlane.xlu0 %211
    %v213 = vmul.f32 %v99, %v95
    %v214 = vmul.f32 %v100, %v96
    %v215 = vadd.f32 %v213, %v214
    %216 = vadd.xlane.f32.xlu0 %v215
    %v217 = vpop.xlane.xlu0 %216
    %v218 = vmul.f32 %v101, %v86
    %v219 = vmul.f32 %v102, %v87
    %v220 = vadd.f32 %v218, %v219
    %221 = vadd.xlane.f32.xlu0 %v220
    %v222 = vpop.xlane.xlu0 %221
    %v223 = vadd.f32 %v222, 0.001
    %v224 = vmul.f32 %v101, %v89
    %v225 = vmul.f32 %v102, %v90
    %v226 = vadd.f32 %v224, %v225
    %227 = vadd.xlane.f32.xlu0 %v226
    %v228 = vpop.xlane.xlu0 %227
    %v229 = vmul.f32 %v101, %v92
    %v230 = vmul.f32 %v102, %v93
    %v231 = vadd.f32 %v229, %v230
    %232 = vadd.xlane.f32.xlu0 %v231
    %v233 = vpop.xlane.xlu0 %232
    %v234 = vmul.f32 %v101, %v95
    %v235 = vmul.f32 %v102, %v96
    %v236 = vadd.f32 %v234, %v235
    %237 = vadd.xlane.f32.xlu0 %v236
    %v238 = vpop.xlane.xlu0 %237
    %v239 = vmul.f32 %v103, %v89
    %v240 = vmul.f32 %v104, %v90
    %v241 = vadd.f32 %v239, %v240
    %242 = vadd.xlane.f32.xlu0 %v241
    %v243 = vpop.xlane.xlu0 %242
    %v244 = vadd.f32 %v243, 0.001
    %v245 = vmul.f32 %v103, %v92
    %v246 = vmul.f32 %v104, %v93
    %v247 = vadd.f32 %v245, %v246
    %248 = vadd.xlane.f32.xlu0 %v247
    %v249 = vpop.xlane.xlu0 %248
    %v250 = vmul.f32 %v103, %v95
    %v251 = vmul.f32 %v104, %v96
    %v252 = vadd.f32 %v250, %v251
    %253 = vadd.xlane.f32.xlu0 %v252
    %v254 = vpop.xlane.xlu0 %253
    %v255 = vmul.f32 %v105, %v92
    %v256 = vmul.f32 %v106, %v93
    %v257 = vadd.f32 %v255, %v256
    %258 = vadd.xlane.f32.xlu0 %v257
    %v259 = vpop.xlane.xlu0 %258
    %v260 = vadd.f32 %v259, 0.001
    %v261 = vmul.f32 %v105, %v95
    %v262 = vmul.f32 %v106, %v96
    %v263 = vadd.f32 %v261, %v262
    %264 = vadd.xlane.f32.xlu0 %v263
    %v265 = vpop.xlane.xlu0 %264
    %v266 = vmul.f32 %v107, %v95
    %v267 = vmul.f32 %v108, %v96
    %v268 = vadd.f32 %v266, %v267
    %269 = vadd.xlane.f32.xlu0 %v268
    %v270 = vpop.xlane.xlu0 %269
    %v271 = vadd.f32 %v270, 0.001
    %v272 = vrcp.pop %v166
    %v273 = vmul.f32 %v166, %v272
    %v274 = vsub.f32 2.0, %v273
    %v275 = vmul.f32 %v272, %v274
    %v276 = vmul.f32 %v171, %v275
    %v277 = vmul.f32 %v276, %v171
    %v278 = vsub.f32 %v197, %v277
    %v279 = vmul.f32 %v276, %v176
    %v280 = vsub.f32 %v202, %v279
    %v281 = vmul.f32 %v276, %v181
    %v282 = vsub.f32 %v207, %v281
    %v283 = vmul.f32 %v276, %v186
    %v284 = vsub.f32 %v212, %v283
    %v285 = vmul.f32 %v276, %v191
    %v286 = vsub.f32 %v217, %v285
    %v287 = vmul.f32 %v176, %v275
    %v288 = vmul.f32 %v287, %v171
    %v289 = vsub.f32 %v202, %v288
    %v290 = vmul.f32 %v287, %v176
    %v291 = vsub.f32 %v223, %v290
    %v292 = vmul.f32 %v287, %v181
    %v293 = vsub.f32 %v228, %v292
    %v294 = vmul.f32 %v287, %v186
    %v295 = vsub.f32 %v233, %v294
    %v296 = vmul.f32 %v287, %v191
    %v297 = vsub.f32 %v238, %v296
    %v298 = vmul.f32 %v181, %v275
    %v299 = vmul.f32 %v298, %v171
    %v300 = vsub.f32 %v207, %v299
    %v301 = vmul.f32 %v298, %v176
    %v302 = vsub.f32 %v228, %v301
    %v303 = vmul.f32 %v298, %v181
    %v304 = vsub.f32 %v244, %v303
    %v305 = vmul.f32 %v298, %v186
    %v306 = vsub.f32 %v249, %v305
    %v307 = vmul.f32 %v298, %v191
    %v308 = vsub.f32 %v254, %v307
    %v309 = vmul.f32 %v186, %v275
    %v310 = vmul.f32 %v309, %v171
    %v311 = vsub.f32 %v212, %v310
    %v312 = vmul.f32 %v309, %v176
    %v313 = vsub.f32 %v233, %v312
    %v314 = vmul.f32 %v309, %v181
    %v315 = vsub.f32 %v249, %v314
    %v316 = vmul.f32 %v309, %v186
    %v317 = vsub.f32 %v260, %v316
    %v318 = vmul.f32 %v309, %v191
    %v319 = vsub.f32 %v265, %v318
    %v320 = vmul.f32 %v191, %v275
    %v321 = vmul.f32 %v320, %v171
    %v322 = vsub.f32 %v217, %v321
    %v323 = vmul.f32 %v320, %v176
    %v324 = vsub.f32 %v238, %v323
    %v325 = vmul.f32 %v320, %v181
    %v326 = vsub.f32 %v254, %v325
    %v327 = vmul.f32 %v320, %v186
    %v328 = vsub.f32 %v265, %v327
    %v329 = vmul.f32 %v320, %v191
    %v330 = vsub.f32 %v271, %v329
    %v331 = vrcp.pop %v278
    %v332 = vmul.f32 %v278, %v331
    %v333 = vsub.f32 2.0, %v332
    %v334 = vmul.f32 %v331, %v333
    %v335 = vmul.f32 %v289, %v334
    %v336 = vmul.f32 %v335, %v280
    %v337 = vsub.f32 %v291, %v336
    %v338 = vmul.f32 %v335, %v282
    %v339 = vsub.f32 %v293, %v338
    %v340 = vmul.f32 %v335, %v284
    %v341 = vsub.f32 %v295, %v340
    %v342 = vmul.f32 %v335, %v286
    %v343 = vsub.f32 %v297, %v342
    %v344 = vmul.f32 %v300, %v334
    %v345 = vmul.f32 %v344, %v280
    %v346 = vsub.f32 %v302, %v345
    %v347 = vmul.f32 %v344, %v282
    %v348 = vsub.f32 %v304, %v347
    %v349 = vmul.f32 %v344, %v284
    %v350 = vsub.f32 %v306, %v349
    %v351 = vmul.f32 %v344, %v286
    %v352 = vsub.f32 %v308, %v351
    %v353 = vmul.f32 %v311, %v334
    %v354 = vmul.f32 %v353, %v280
    %v355 = vsub.f32 %v313, %v354
    %v356 = vmul.f32 %v353, %v282
    %v357 = vsub.f32 %v315, %v356
    %v358 = vmul.f32 %v353, %v284
    %v359 = vsub.f32 %v317, %v358
    %v360 = vmul.f32 %v353, %v286
    %v361 = vsub.f32 %v319, %v360
    %v362 = vmul.f32 %v322, %v334
    %v363 = vmul.f32 %v362, %v280
    %v364 = vsub.f32 %v324, %v363
    %v365 = vmul.f32 %v362, %v282
    %v366 = vsub.f32 %v326, %v365
    %v367 = vmul.f32 %v362, %v284
    %v368 = vsub.f32 %v328, %v367
    %v369 = vmul.f32 %v362, %v286
    %v370 = vsub.f32 %v330, %v369
    %v371 = vrcp.pop %v337
    %v372 = vmul.f32 %v337, %v371
    %v373 = vsub.f32 2.0, %v372
    %v374 = vmul.f32 %v371, %v373
    %v375 = vmul.f32 %v346, %v374
    %v376 = vmul.f32 %v375, %v339
    %v377 = vsub.f32 %v348, %v376
    %v378 = vmul.f32 %v375, %v341
    %v379 = vsub.f32 %v350, %v378
    %v380 = vmul.f32 %v375, %v343
    %v381 = vsub.f32 %v352, %v380
    %v382 = vmul.f32 %v355, %v374
    %v383 = vmul.f32 %v382, %v339
    %v384 = vsub.f32 %v357, %v383
    %v385 = vmul.f32 %v382, %v341
    %v386 = vsub.f32 %v359, %v385
    %v387 = vmul.f32 %v382, %v343
    %v388 = vsub.f32 %v361, %v387
    %v389 = vmul.f32 %v364, %v374
    %v390 = vmul.f32 %v389, %v339
    %v391 = vsub.f32 %v366, %v390
    %v392 = vmul.f32 %v389, %v341
    %v393 = vsub.f32 %v368, %v392
    %v394 = vmul.f32 %v389, %v343
    %v395 = vsub.f32 %v370, %v394
    %v396 = vrcp.pop %v377
    %v397 = vmul.f32 %v377, %v396
    %v398 = vsub.f32 2.0, %v397
    %v399 = vmul.f32 %v396, %v398
    %v400 = vmul.f32 %v384, %v399
    %v401 = vmul.f32 %v400, %v379
    %v402 = vsub.f32 %v386, %v401
    %v403 = vmul.f32 %v400, %v381
    %v404 = vsub.f32 %v388, %v403
    %v405 = vmul.f32 %v391, %v399
    %v406 = vmul.f32 %v405, %v379
    %v407 = vsub.f32 %v393, %v406
    %v408 = vmul.f32 %v405, %v381
    %v409 = vsub.f32 %v395, %v408
    %v410 = vrcp.pop %v402
    %v411 = vmul.f32 %v402, %v410
    %v412 = vsub.f32 2.0, %v411
    %v413 = vmul.f32 %v410, %v412
    %v414 = vmul.f32 %v407, %v413
    %v415 = vmul.f32 %v414, %v404
    %v416 = vsub.f32 %v409, %v415
    %v417 = vrcp.pop %v416
    %v418 = vmul.f32 %v416, %v417
    %v419 = vsub.f32 2.0, %v418
    %v420 = vmul.f32 %v417, %v419
    %v421 = vmul.f32 %v276, %v97
    %v422 = vmul.f32 %v276, %v98
    %v423 = vsub.f32 %v99, %v421
    %v424 = vsub.f32 %v100, %v422
    %v425 = vmul.f32 %v287, %v97
    %v426 = vmul.f32 %v287, %v98
    %v427 = vsub.f32 %v101, %v425
    %v428 = vsub.f32 %v102, %v426
    %v429 = vmul.f32 %v298, %v97
    %v430 = vmul.f32 %v298, %v98
    %v431 = vsub.f32 %v103, %v429
    %v432 = vsub.f32 %v104, %v430
    %v433 = vmul.f32 %v309, %v97
    %v434 = vmul.f32 %v309, %v98
    %v435 = vsub.f32 %v105, %v433
    %v436 = vsub.f32 %v106, %v434
    %v437 = vmul.f32 %v320, %v97
    %v438 = vmul.f32 %v320, %v98
    %v439 = vsub.f32 %v107, %v437
    %v440 = vsub.f32 %v108, %v438
    %v441 = vmul.f32 %v335, %v423
    %v442 = vmul.f32 %v335, %v424
    %v443 = vsub.f32 %v427, %v441
    %v444 = vsub.f32 %v428, %v442
    %v445 = vmul.f32 %v344, %v423
    %v446 = vmul.f32 %v344, %v424
    %v447 = vsub.f32 %v431, %v445
    %v448 = vsub.f32 %v432, %v446
    %v449 = vmul.f32 %v353, %v423
    %v450 = vmul.f32 %v353, %v424
    %v451 = vsub.f32 %v435, %v449
    %v452 = vsub.f32 %v436, %v450
    %v453 = vmul.f32 %v362, %v423
    %v454 = vmul.f32 %v362, %v424
    %v455 = vsub.f32 %v439, %v453
    %v456 = vsub.f32 %v440, %v454
    %v457 = vmul.f32 %v375, %v443
    %v458 = vmul.f32 %v375, %v444
    %v459 = vsub.f32 %v447, %v457
    %v460 = vsub.f32 %v448, %v458
    %v461 = vmul.f32 %v382, %v443
    %v462 = vmul.f32 %v382, %v444
    %v463 = vsub.f32 %v451, %v461
    %v464 = vsub.f32 %v452, %v462
    %v465 = vmul.f32 %v389, %v443
    %v466 = vmul.f32 %v389, %v444
    %v467 = vsub.f32 %v455, %v465
    %v468 = vsub.f32 %v456, %v466
    %v469 = vmul.f32 %v400, %v459
    %v470 = vmul.f32 %v400, %v460
    %v471 = vsub.f32 %v463, %v469
    %v472 = vsub.f32 %v464, %v470
    %v473 = vmul.f32 %v405, %v459
    %v474 = vmul.f32 %v405, %v460
    %v475 = vsub.f32 %v467, %v473
    %v476 = vsub.f32 %v468, %v474
    %v477 = vmul.f32 %v414, %v471
    %v478 = vmul.f32 %v414, %v472
    %v479 = vsub.f32 %v475, %v477
    %v480 = vsub.f32 %v476, %v478
    %v481 = vmul.f32 %v479, %v420
    %v482 = vmul.f32 %v480, %v420
    %v483 = vmul.f32 %v404, %v481
    %v484 = vmul.f32 %v404, %v482
    %v485 = vsub.f32 %v471, %v483
    %v486 = vsub.f32 %v472, %v484
    %v487 = vmul.f32 %v485, %v413
    %v488 = vmul.f32 %v486, %v413
    %v489 = vmul.f32 %v379, %v487
    %v490 = vmul.f32 %v379, %v488
    %v491 = vsub.f32 %v459, %v489
    %v492 = vsub.f32 %v460, %v490
    %v493 = vmul.f32 %v381, %v481
    %v494 = vmul.f32 %v381, %v482
    %v495 = vsub.f32 %v491, %v493
    %v496 = vsub.f32 %v492, %v494
    %v497 = vmul.f32 %v495, %v399
    %v498 = vmul.f32 %v496, %v399
    %v499 = vmul.f32 %v339, %v497
    %v500 = vmul.f32 %v339, %v498
    %v501 = vsub.f32 %v443, %v499
    %v502 = vsub.f32 %v444, %v500
    %v503 = vmul.f32 %v341, %v487
    %v504 = vmul.f32 %v341, %v488
    %v505 = vsub.f32 %v501, %v503
    %v506 = vsub.f32 %v502, %v504
    %v507 = vmul.f32 %v343, %v481
    %v508 = vmul.f32 %v343, %v482
    %v509 = vsub.f32 %v505, %v507
    %v510 = vsub.f32 %v506, %v508
    %v511 = vmul.f32 %v509, %v374
    %v512 = vmul.f32 %v510, %v374
    %v513 = vmul.f32 %v280, %v511
    %v514 = vmul.f32 %v280, %v512
    %v515 = vsub.f32 %v423, %v513
    %v516 = vsub.f32 %v424, %v514
    %v517 = vmul.f32 %v282, %v497
    %v518 = vmul.f32 %v282, %v498
    %v519 = vsub.f32 %v515, %v517
    %v520 = vsub.f32 %v516, %v518
    %v521 = vmul.f32 %v284, %v487
    %v522 = vmul.f32 %v284, %v488
    %v523 = vsub.f32 %v519, %v521
    %v524 = vsub.f32 %v520, %v522
    %v525 = vmul.f32 %v286, %v481
    %v526 = vmul.f32 %v286, %v482
    %v527 = vsub.f32 %v523, %v525
    %v528 = vsub.f32 %v524, %v526
    %v529 = vmul.f32 %v527, %v334
    %v530 = vmul.f32 %v528, %v334
    %v531 = vmul.f32 %v171, %v529
    %v532 = vmul.f32 %v171, %v530
    %v533 = vsub.f32 %v97, %v531
    %v534 = vsub.f32 %v98, %v532
    %v535 = vmul.f32 %v176, %v511
    %v536 = vmul.f32 %v176, %v512
    %v537 = vsub.f32 %v533, %v535
    %v538 = vsub.f32 %v534, %v536
    %v539 = vmul.f32 %v181, %v497
    %v540 = vmul.f32 %v181, %v498
    %v541 = vsub.f32 %v537, %v539
    %v542 = vsub.f32 %v538, %v540
    %v543 = vmul.f32 %v186, %v487
    %v544 = vmul.f32 %v186, %v488
    %v545 = vsub.f32 %v541, %v543
    %v546 = vsub.f32 %v542, %v544
    %v547 = vmul.f32 %v191, %v481
    %v548 = vmul.f32 %v191, %v482
    %v549 = vsub.f32 %v545, %v547
    %v550 = vsub.f32 %v546, %v548
    %v551 = vmul.f32 %v549, %v275
    %v552 = vmul.f32 %v550, %v275
    %v553 = vld [vmem:[#allocation8] sm:$0xff]
    %555 = vset.pattern.permute.xlu0 0
    %556 = vperm.xlu0 %555, %v553
    %v557 = vpop.permute.xlu0 %556
    %v559 = vmul.f32 %v80, %v557
    %v560 = vmul.f32 %v81, %v557
    %v561 = vadd.f32 %v159, %v559
    %v562 = vadd.f32 %v160, %v560
    %563 = vset.pattern.permute.xlu0 1
    %564 = vperm.xlu0 %563, %v553
    %v565 = vpop.permute.xlu0 %564
    %v567 = vmul.f32 %v83, %v565
    %v568 = vmul.f32 %v84, %v565
    %v569 = vadd.f32 %v561, %v567
    %v570 = vadd.f32 %v562, %v568
    %571 = vset.pattern.permute.xlu0 2
    %572 = vperm.xlu0 %571, %v553
    %v573 = vpop.permute.xlu0 %572
    %v575 = vmul.f32 %v86, %v573
    %v576 = vmul.f32 %v87, %v573
    %v577 = vadd.f32 %v569, %v575
    %v578 = vadd.f32 %v570, %v576
    %579 = vset.pattern.permute.xlu0 3
    %580 = vperm.xlu0 %579, %v553
    %v581 = vpop.permute.xlu0 %580
    %v583 = vmul.f32 %v89, %v581
    %v584 = vmul.f32 %v90, %v581
    %v585 = vadd.f32 %v577, %v583
    %v586 = vadd.f32 %v578, %v584
    %587 = vset.pattern.permute.xlu0 4
    %588 = vperm.xlu0 %587, %v553
    %v589 = vpop.permute.xlu0 %588
    %v591 = vmul.f32 %v92, %v589
    %v592 = vmul.f32 %v93, %v589
    %v593 = vadd.f32 %v585, %v591
    %v594 = vadd.f32 %v586, %v592
    %595 = vset.pattern.permute.xlu0 5
    %596 = vperm.xlu0 %595, %v553
    %v597 = vpop.permute.xlu0 %596
    %v599 = vmul.f32 %v95, %v597
    %v600 = vmul.f32 %v96, %v597
    %v601 = vadd.f32 %v593, %v599
    %v602 = vadd.f32 %v594, %v600
    %v603 = vmul.f32 %v551, %v601
    %v604 = vmul.f32 %v552, %v602
    %v605 = vadd.f32 %v603, %v604
    %606 = vadd.xlane.f32.xlu0 %v605
    %v607 = vpop.xlane.xlu0 %606
    %v608 = vsub.f32 %v553, %v607
    %v609 = vmul.f32 %v529, %v601
    %v610 = vmul.f32 %v530, %v602
    %v611 = vadd.f32 %v609, %v610
    %612 = vadd.xlane.f32.xlu0 %v611
    %v613 = vpop.xlane.xlu0 %612
    %v614 = vsub.f32 %v553, %v613
    %v615 = vmul.f32 %v511, %v601
    %v616 = vmul.f32 %v512, %v602
    %v617 = vadd.f32 %v615, %v616
    %618 = vadd.xlane.f32.xlu0 %v617
    %v619 = vpop.xlane.xlu0 %618
    %v620 = vsub.f32 %v553, %v619
    %v621 = vmul.f32 %v497, %v601
    %v622 = vmul.f32 %v498, %v602
    %v623 = vadd.f32 %v621, %v622
    %624 = vadd.xlane.f32.xlu0 %v623
    %v625 = vpop.xlane.xlu0 %624
    %v626 = vsub.f32 %v553, %v625
    %v627 = vmul.f32 %v487, %v601
    %v628 = vmul.f32 %v488, %v602
    %v629 = vadd.f32 %v627, %v628
    %630 = vadd.xlane.f32.xlu0 %v629
    %v631 = vpop.xlane.xlu0 %630
    %v632 = vsub.f32 %v553, %v631
    %v633 = vmul.f32 %v481, %v601
    %v634 = vmul.f32 %v482, %v602
    %v635 = vadd.f32 %v633, %v634
    %636 = vadd.xlane.f32.xlu0 %v635
    %v637 = vpop.xlane.xlu0 %636
    %v638 = vsub.f32 %v553, %v637
    %640 = vset.pattern.permute.xlu0 0
    %641 = vperm.xlu0 %640, %v608
    %v642 = vpop.permute.xlu0 %641
    %v644 = vmul.f32 %v80, %v642
    %v645 = vmul.f32 %v81, %v642
    %v646 = vadd.f32 %v159, %v644
    %v647 = vadd.f32 %v160, %v645
    %649 = vset.pattern.permute.xlu0 1
    %650 = vperm.xlu0 %649, %v614
    %v651 = vpop.permute.xlu0 %650
    %v653 = vmul.f32 %v83, %v651
    %v654 = vmul.f32 %v84, %v651
    %v655 = vadd.f32 %v646, %v653
    %v656 = vadd.f32 %v647, %v654
    %658 = vset.pattern.permute.xlu0 2
    %659 = vperm.xlu0 %658, %v620
    %v660 = vpop.permute.xlu0 %659
    %v662 = vmul.f32 %v86, %v660
    %v663 = vmul.f32 %v87, %v660
    %v664 = vadd.f32 %v655, %v662
    %v665 = vadd.f32 %v656, %v663
    %667 = vset.pattern.permute.xlu0 3
    %668 = vperm.xlu0 %667, %v626
    %v669 = vpop.permute.xlu0 %668
    %v671 = vmul.f32 %v89, %v669
    %v672 = vmul.f32 %v90, %v669
    %v673 = vadd.f32 %v664, %v671
    %v674 = vadd.f32 %v665, %v672
    %676 = vset.pattern.permute.xlu0 4
    %677 = vperm.xlu0 %676, %v632
    %v678 = vpop.permute.xlu0 %677
    %v680 = vmul.f32 %v92, %v678
    %v681 = vmul.f32 %v93, %v678
    %v682 = vadd.f32 %v673, %v680
    %v683 = vadd.f32 %v674, %v681
    %685 = vset.pattern.permute.xlu0 5
    %686 = vperm.xlu0 %685, %v638
    %v687 = vpop.permute.xlu0 %686
    %v689 = vmul.f32 %v95, %v687
    %v690 = vmul.f32 %v96, %v687
    %v691 = vadd.f32 %v682, %v689
    %v692 = vadd.f32 %v683, %v690
    %v693 = vmul.f32 %v551, %v691
    %v694 = vmul.f32 %v552, %v692
    %v695 = vadd.f32 %v693, %v694
    %696 = vadd.xlane.f32.xlu0 %v695
    %v697 = vpop.xlane.xlu0 %696
    %v698 = vsub.f32 %v608, %v697
    %v699 = vmul.f32 %v529, %v691
    %v700 = vmul.f32 %v530, %v692
    %v701 = vadd.f32 %v699, %v700
    %702 = vadd.xlane.f32.xlu0 %v701
    %v703 = vpop.xlane.xlu0 %702
    %v704 = vsub.f32 %v614, %v703
    %v705 = vmul.f32 %v511, %v691
    %v706 = vmul.f32 %v512, %v692
    %v707 = vadd.f32 %v705, %v706
    %708 = vadd.xlane.f32.xlu0 %v707
    %v709 = vpop.xlane.xlu0 %708
    %v710 = vsub.f32 %v620, %v709
    %v711 = vmul.f32 %v497, %v691
    %v712 = vmul.f32 %v498, %v692
    %v713 = vadd.f32 %v711, %v712
    %714 = vadd.xlane.f32.xlu0 %v713
    %v715 = vpop.xlane.xlu0 %714
    %v716 = vsub.f32 %v626, %v715
    %v717 = vmul.f32 %v487, %v691
    %v718 = vmul.f32 %v488, %v692
    %v719 = vadd.f32 %v717, %v718
    %720 = vadd.xlane.f32.xlu0 %v719
    %v721 = vpop.xlane.xlu0 %720
    %v722 = vsub.f32 %v632, %v721
    %v723 = vmul.f32 %v481, %v691
    %v724 = vmul.f32 %v482, %v692
    %v725 = vadd.f32 %v723, %v724
    %726 = vadd.xlane.f32.xlu0 %v725
    %v727 = vpop.xlane.xlu0 %726
    %v728 = vsub.f32 %v638, %v727
    %730 = vset.pattern.permute.xlu0 0
    %731 = vperm.xlu0 %730, %v698
    %v732 = vpop.permute.xlu0 %731
    %v734 = vmul.f32 %v80, %v732
    %v735 = vmul.f32 %v81, %v732
    %v736 = vadd.f32 %v159, %v734
    %v737 = vadd.f32 %v160, %v735
    %739 = vset.pattern.permute.xlu0 1
    %740 = vperm.xlu0 %739, %v704
    %v741 = vpop.permute.xlu0 %740
    %v743 = vmul.f32 %v83, %v741
    %v744 = vmul.f32 %v84, %v741
    %v745 = vadd.f32 %v736, %v743
    %v746 = vadd.f32 %v737, %v744
    %748 = vset.pattern.permute.xlu0 2
    %749 = vperm.xlu0 %748, %v710
    %v750 = vpop.permute.xlu0 %749
    %v752 = vmul.f32 %v86, %v750
    %v753 = vmul.f32 %v87, %v750
    %v754 = vadd.f32 %v745, %v752
    %v755 = vadd.f32 %v746, %v753
    %757 = vset.pattern.permute.xlu0 3
    %758 = vperm.xlu0 %757, %v716
    %v759 = vpop.permute.xlu0 %758
    %v761 = vmul.f32 %v89, %v759
    %v762 = vmul.f32 %v90, %v759
    %v763 = vadd.f32 %v754, %v761
    %v764 = vadd.f32 %v755, %v762
    %766 = vset.pattern.permute.xlu0 4
    %767 = vperm.xlu0 %766, %v722
    %v768 = vpop.permute.xlu0 %767
    %v770 = vmul.f32 %v92, %v768
    %v771 = vmul.f32 %v93, %v768
    %v772 = vadd.f32 %v763, %v770
    %v773 = vadd.f32 %v764, %v771
    %775 = vset.pattern.permute.xlu0 5
    %776 = vperm.xlu0 %775, %v728
    %v777 = vpop.permute.xlu0 %776
    %v779 = vmul.f32 %v95, %v777
    %v780 = vmul.f32 %v96, %v777
    %v781 = vadd.f32 %v772, %v779
    %v782 = vadd.f32 %v773, %v780
    %v783 = vmul.f32 %v551, %v781
    %v784 = vmul.f32 %v552, %v782
    %v785 = vadd.f32 %v783, %v784
    %786 = vadd.xlane.f32.xlu0 %v785
    %v787 = vpop.xlane.xlu0 %786
    %v788 = vsub.f32 %v698, %v787
    %v789 = vmul.f32 %v529, %v781
    %v790 = vmul.f32 %v530, %v782
    %v791 = vadd.f32 %v789, %v790
    %792 = vadd.xlane.f32.xlu0 %v791
    %v793 = vpop.xlane.xlu0 %792
    %v794 = vsub.f32 %v704, %v793
    %v795 = vmul.f32 %v511, %v781
    %v796 = vmul.f32 %v512, %v782
    %v797 = vadd.f32 %v795, %v796
    %798 = vadd.xlane.f32.xlu0 %v797
    %v799 = vpop.xlane.xlu0 %798
    %v800 = vsub.f32 %v710, %v799
    %v801 = vmul.f32 %v497, %v781
    %v802 = vmul.f32 %v498, %v782
    %v803 = vadd.f32 %v801, %v802
    %804 = vadd.xlane.f32.xlu0 %v803
    %v805 = vpop.xlane.xlu0 %804
    %v806 = vsub.f32 %v716, %v805
    %v807 = vmul.f32 %v487, %v781
    %v808 = vmul.f32 %v488, %v782
    %v809 = vadd.f32 %v807, %v808
    %810 = vadd.xlane.f32.xlu0 %v809
    %v811 = vpop.xlane.xlu0 %810
    %v812 = vsub.f32 %v722, %v811
    %v813 = vmul.f32 %v481, %v781
    %v814 = vmul.f32 %v482, %v782
    %v815 = vadd.f32 %v813, %v814
    %816 = vadd.xlane.f32.xlu0 %v815
    %v817 = vpop.xlane.xlu0 %816
    %v818 = vsub.f32 %v728, %v817
    %820 = vset.pattern.permute.xlu0 0
    %821 = vperm.xlu0 %820, %v788
    %v822 = vpop.permute.xlu0 %821
    %v824 = vmul.f32 %v80, %v822
    %v825 = vmul.f32 %v81, %v822
    %v826 = vadd.f32 %v159, %v824
    %v827 = vadd.f32 %v160, %v825
    %829 = vset.pattern.permute.xlu0 1
    %830 = vperm.xlu0 %829, %v794
    %v831 = vpop.permute.xlu0 %830
    %v833 = vmul.f32 %v83, %v831
    %v834 = vmul.f32 %v84, %v831
    %v835 = vadd.f32 %v826, %v833
    %v836 = vadd.f32 %v827, %v834
    %838 = vset.pattern.permute.xlu0 2
    %839 = vperm.xlu0 %838, %v800
    %v840 = vpop.permute.xlu0 %839
    %v842 = vmul.f32 %v86, %v840
    %v843 = vmul.f32 %v87, %v840
    %v844 = vadd.f32 %v835, %v842
    %v845 = vadd.f32 %v836, %v843
    %847 = vset.pattern.permute.xlu0 3
    %848 = vperm.xlu0 %847, %v806
    %v849 = vpop.permute.xlu0 %848
    %v851 = vmul.f32 %v89, %v849
    %v852 = vmul.f32 %v90, %v849
    %v853 = vadd.f32 %v844, %v851
    %v854 = vadd.f32 %v845, %v852
    %856 = vset.pattern.permute.xlu0 4
    %857 = vperm.xlu0 %856, %v812
    %v858 = vpop.permute.xlu0 %857
    %v860 = vmul.f32 %v92, %v858
    %v861 = vmul.f32 %v93, %v858
    %v862 = vadd.f32 %v853, %v860
    %v863 = vadd.f32 %v854, %v861
    %865 = vset.pattern.permute.xlu0 5
    %866 = vperm.xlu0 %865, %v818
    %v867 = vpop.permute.xlu0 %866
    %v869 = vmul.f32 %v95, %v867
    %v870 = vmul.f32 %v96, %v867
    %v871 = vadd.f32 %v862, %v869
    %v872 = vadd.f32 %v863, %v870
    %v873 = vmul.f32 %v551, %v871
    %v874 = vmul.f32 %v552, %v872
    %v875 = vadd.f32 %v873, %v874
    %876 = vadd.xlane.f32.xlu0 %v875
    %v877 = vpop.xlane.xlu0 %876
    %v878 = vsub.f32 %v788, %v877
    %v879 = vmul.f32 %v529, %v871
    %v880 = vmul.f32 %v530, %v872
    %v881 = vadd.f32 %v879, %v880
    %882 = vadd.xlane.f32.xlu0 %v881
    %v883 = vpop.xlane.xlu0 %882
    %v884 = vsub.f32 %v794, %v883
    %v885 = vmul.f32 %v511, %v871
    %v886 = vmul.f32 %v512, %v872
    %v887 = vadd.f32 %v885, %v886
    %888 = vadd.xlane.f32.xlu0 %v887
    %v889 = vpop.xlane.xlu0 %888
    %v890 = vsub.f32 %v800, %v889
    %v891 = vmul.f32 %v497, %v871
    %v892 = vmul.f32 %v498, %v872
    %v893 = vadd.f32 %v891, %v892
    %894 = vadd.xlane.f32.xlu0 %v893
    %v895 = vpop.xlane.xlu0 %894
    %v896 = vsub.f32 %v806, %v895
    %v897 = vmul.f32 %v487, %v871
    %v898 = vmul.f32 %v488, %v872
    %v899 = vadd.f32 %v897, %v898
    %900 = vadd.xlane.f32.xlu0 %v899
    %v901 = vpop.xlane.xlu0 %900
    %v902 = vsub.f32 %v812, %v901
    %v903 = vmul.f32 %v481, %v871
    %v904 = vmul.f32 %v482, %v872
    %v905 = vadd.f32 %v903, %v904
    %906 = vadd.xlane.f32.xlu0 %v905
    %v907 = vpop.xlane.xlu0 %906
    %v908 = vsub.f32 %v818, %v907
    %910 = vset.pattern.permute.xlu0 0
    %911 = vperm.xlu0 %910, %v878
    %v912 = vpop.permute.xlu0 %911
    %v914 = vmul.f32 %v80, %v912
    %v915 = vmul.f32 %v81, %v912
    %v916 = vadd.f32 %v159, %v914
    %v917 = vadd.f32 %v160, %v915
    %919 = vset.pattern.permute.xlu0 1
    %920 = vperm.xlu0 %919, %v884
    %v921 = vpop.permute.xlu0 %920
    %v923 = vmul.f32 %v83, %v921
    %v924 = vmul.f32 %v84, %v921
    %v925 = vadd.f32 %v916, %v923
    %v926 = vadd.f32 %v917, %v924
    %928 = vset.pattern.permute.xlu0 2
    %929 = vperm.xlu0 %928, %v890
    %v930 = vpop.permute.xlu0 %929
    %v932 = vmul.f32 %v86, %v930
    %v933 = vmul.f32 %v87, %v930
    %v934 = vadd.f32 %v925, %v932
    %v935 = vadd.f32 %v926, %v933
    %937 = vset.pattern.permute.xlu0 3
    %938 = vperm.xlu0 %937, %v896
    %v939 = vpop.permute.xlu0 %938
    %v941 = vmul.f32 %v89, %v939
    %v942 = vmul.f32 %v90, %v939
    %v943 = vadd.f32 %v934, %v941
    %v944 = vadd.f32 %v935, %v942
    %946 = vset.pattern.permute.xlu0 4
    %947 = vperm.xlu0 %946, %v902
    %v948 = vpop.permute.xlu0 %947
    %v950 = vmul.f32 %v92, %v948
    %v951 = vmul.f32 %v93, %v948
    %v952 = vadd.f32 %v943, %v950
    %v953 = vadd.f32 %v944, %v951
    %955 = vset.pattern.permute.xlu0 5
    %956 = vperm.xlu0 %955, %v908
    %v957 = vpop.permute.xlu0 %956
    %v959 = vmul.f32 %v95, %v957
    %v960 = vmul.f32 %v96, %v957
    %v961 = vadd.f32 %v952, %v959
    %v962 = vadd.f32 %v953, %v960
    %v963 = vmul.f32 %v551, %v961
    %v964 = vmul.f32 %v552, %v962
    %v965 = vadd.f32 %v963, %v964
    %966 = vadd.xlane.f32.xlu0 %v965
    %v967 = vpop.xlane.xlu0 %966
    %v968 = vsub.f32 %v878, %v967
    %v969 = vmul.f32 %v529, %v961
    %v970 = vmul.f32 %v530, %v962
    %v971 = vadd.f32 %v969, %v970
    %972 = vadd.xlane.f32.xlu0 %v971
    %v973 = vpop.xlane.xlu0 %972
    %v974 = vsub.f32 %v884, %v973
    %v975 = vmul.f32 %v511, %v961
    %v976 = vmul.f32 %v512, %v962
    %v977 = vadd.f32 %v975, %v976
    %978 = vadd.xlane.f32.xlu0 %v977
    %v979 = vpop.xlane.xlu0 %978
    %v980 = vsub.f32 %v890, %v979
    %v981 = vmul.f32 %v497, %v961
    %v982 = vmul.f32 %v498, %v962
    %v983 = vadd.f32 %v981, %v982
    %984 = vadd.xlane.f32.xlu0 %v983
    %v985 = vpop.xlane.xlu0 %984
    %v986 = vsub.f32 %v896, %v985
    %v987 = vmul.f32 %v487, %v961
    %v988 = vmul.f32 %v488, %v962
    %v989 = vadd.f32 %v987, %v988
    %990 = vadd.xlane.f32.xlu0 %v989
    %v991 = vpop.xlane.xlu0 %990
    %v992 = vsub.f32 %v902, %v991
    %v993 = vmul.f32 %v481, %v961
    %v994 = vmul.f32 %v482, %v962
    %v995 = vadd.f32 %v993, %v994
    %996 = vadd.xlane.f32.xlu0 %v995
    %v997 = vpop.xlane.xlu0 %996
    %v998 = vsub.f32 %v908, %v997
    %1000 = vset.pattern.permute.xlu0 0
    %1001 = vperm.xlu0 %1000, %v968
    %v1002 = vpop.permute.xlu0 %1001
    %v1004 = vmul.f32 %v80, %v1002
    %v1005 = vmul.f32 %v81, %v1002
    %v1006 = vadd.f32 %v159, %v1004
    %v1007 = vadd.f32 %v160, %v1005
    %1009 = vset.pattern.permute.xlu0 1
    %1010 = vperm.xlu0 %1009, %v974
    %v1011 = vpop.permute.xlu0 %1010
    %v1013 = vmul.f32 %v83, %v1011
    %v1014 = vmul.f32 %v84, %v1011
    %v1015 = vadd.f32 %v1006, %v1013
    %v1016 = vadd.f32 %v1007, %v1014
    %1018 = vset.pattern.permute.xlu0 2
    %1019 = vperm.xlu0 %1018, %v980
    %v1020 = vpop.permute.xlu0 %1019
    %v1022 = vmul.f32 %v86, %v1020
    %v1023 = vmul.f32 %v87, %v1020
    %v1024 = vadd.f32 %v1015, %v1022
    %v1025 = vadd.f32 %v1016, %v1023
    %1027 = vset.pattern.permute.xlu0 3
    %1028 = vperm.xlu0 %1027, %v986
    %v1029 = vpop.permute.xlu0 %1028
    %v1031 = vmul.f32 %v89, %v1029
    %v1032 = vmul.f32 %v90, %v1029
    %v1033 = vadd.f32 %v1024, %v1031
    %v1034 = vadd.f32 %v1025, %v1032
    %1036 = vset.pattern.permute.xlu0 4
    %1037 = vperm.xlu0 %1036, %v992
    %v1038 = vpop.permute.xlu0 %1037
    %v1040 = vmul.f32 %v92, %v1038
    %v1041 = vmul.f32 %v93, %v1038
    %v1042 = vadd.f32 %v1033, %v1040
    %v1043 = vadd.f32 %v1034, %v1041
    %1045 = vset.pattern.permute.xlu0 5
    %1046 = vperm.xlu0 %1045, %v998
    %v1047 = vpop.permute.xlu0 %1046
    %v1049 = vmul.f32 %v95, %v1047
    %v1050 = vmul.f32 %v96, %v1047
    %v1051 = vadd.f32 %v1042, %v1049
    %v1052 = vadd.f32 %v1043, %v1050
    %v1053 = vmul.f32 %v551, %v1051
    %v1054 = vmul.f32 %v552, %v1052
    %v1055 = vadd.f32 %v1053, %v1054
    %1056 = vadd.xlane.f32.xlu0 %v1055
    %v1057 = vpop.xlane.xlu0 %1056
    %v1058 = vsub.f32 %v968, %v1057
    %v1059 = vmul.f32 %v529, %v1051
    %v1060 = vmul.f32 %v530, %v1052
    %v1061 = vadd.f32 %v1059, %v1060
    %1062 = vadd.xlane.f32.xlu0 %v1061
    %v1063 = vpop.xlane.xlu0 %1062
    %v1064 = vsub.f32 %v974, %v1063
    %v1065 = vmul.f32 %v511, %v1051
    %v1066 = vmul.f32 %v512, %v1052
    %v1067 = vadd.f32 %v1065, %v1066
    %1068 = vadd.xlane.f32.xlu0 %v1067
    %v1069 = vpop.xlane.xlu0 %1068
    %v1070 = vsub.f32 %v980, %v1069
    %v1071 = vmul.f32 %v497, %v1051
    %v1072 = vmul.f32 %v498, %v1052
    %v1073 = vadd.f32 %v1071, %v1072
    %1074 = vadd.xlane.f32.xlu0 %v1073
    %v1075 = vpop.xlane.xlu0 %1074
    %v1076 = vsub.f32 %v986, %v1075
    %v1077 = vmul.f32 %v487, %v1051
    %v1078 = vmul.f32 %v488, %v1052
    %v1079 = vadd.f32 %v1077, %v1078
    %1080 = vadd.xlane.f32.xlu0 %v1079
    %v1081 = vpop.xlane.xlu0 %1080
    %v1082 = vsub.f32 %v992, %v1081
    %v1083 = vmul.f32 %v481, %v1051
    %v1084 = vmul.f32 %v482, %v1052
    %v1085 = vadd.f32 %v1083, %v1084
    %1086 = vadd.xlane.f32.xlu0 %v1085
    %v1087 = vpop.xlane.xlu0 %1086
    %v1088 = vsub.f32 %v998, %v1087
    %v1089 = vlaneseq
    %v1090 = vand.u32 %v1089, 127
    %vm1091 = vcmp.eq.s32.totalorder %v1090, 0
    %1093 = vset.pattern.permute.xlu0 0
    %1094 = vperm.xlu0 %1093, %v1058
    %v1095 = vpop.permute.xlu0 %1094
    %v1097 = vsel %vm1091, %v1095, %v553
    %vm1098 = vcmp.eq.s32.totalorder %v1090, 1
    %1100 = vset.pattern.permute.xlu0 1
    %1101 = vperm.xlu0 %1100, %v1064
    %v1102 = vpop.permute.xlu0 %1101
    %v1104 = vsel %vm1098, %v1102, %v1097
    %vm1105 = vcmp.eq.s32.totalorder %v1090, 2
    %1107 = vset.pattern.permute.xlu0 2
    %1108 = vperm.xlu0 %1107, %v1070
    %v1109 = vpop.permute.xlu0 %1108
    %v1111 = vsel %vm1105, %v1109, %v1104
    %vm1112 = vcmp.eq.s32.totalorder %v1090, 3
    %1114 = vset.pattern.permute.xlu0 3
    %1115 = vperm.xlu0 %1114, %v1076
    %v1116 = vpop.permute.xlu0 %1115
    %v1118 = vsel %vm1112, %v1116, %v1111
    %vm1119 = vcmp.eq.s32.totalorder %v1090, 4
    %1121 = vset.pattern.permute.xlu0 4
    %1122 = vperm.xlu0 %1121, %v1082
    %v1123 = vpop.permute.xlu0 %1122
    %v1125 = vsel %vm1119, %v1123, %v1118
    %vm1126 = vcmp.eq.s32.totalorder %v1090, 5
    %1128 = vset.pattern.permute.xlu0 5
    %1129 = vperm.xlu0 %1128, %v1088
    %v1130 = vpop.permute.xlu0 %1129
    %v1132 = vsel %vm1126, %v1130, %v1125
    %vm1133 = vcmask 48128
    %1134 = vst.msk [vmem:[#allocation10] sm:$0xff] %vm1133, %v1132
    // Predicated region
    $region38: #{dense_ba.1} parent=1 // pred_check
      _
    $region39: #{dense_ba.1} parent=1 // pred_check_branch
      %1136 = sbr.rel (0) target = $region41
    $region40: #{dense_ba.1} parent=1 // pred_region
      %1138 = vsyncadd [#allocation4], 0
      %s1140 = sshll.u32 [#allocation10], 4
      %s1141 = int_to_ptr.vmem [resolvable:$true] %s1140
      %s1142 = sshll.u32 %s5, 4
      %s1143 = int_to_ptr.hbm [resolvable:$true] %s1142
      %1145 = dma.vmem_to_hbm [thread:$0]  %s1141, 128, %s1143, [#allocation4]
    $region41: #{dense_ba.1} parent=1 // pred_fallthru
      _
    // Predicated region
    $region42: #{dense_ba.1} parent=1 // pred_check
      _
    $region43: #{dense_ba.1} parent=1 // pred_check_branch
      %1147 = sbr.rel (0) target = $region45
    $region44: #{dense_ba.1} parent=1 // pred_region
      %1149 = dma.done [#allocation4], 128
    $region45: #{dense_ba.1} parent=1 // pred_fallthru
      _
    %1150 = vsyncpa [#allocation3], 1
    %1151 = vsyncpa [#allocation6], 1
    %1152 = vsyncpa [#allocation9], 1
    %1153 = vsyncpa [#allocation4], 1

</llo_original>
